<compile_context>
chip_gen: v7x
topology: tpu7x:2x2x1
jax: 0.10.0
libtpu: 0.0.40
codegen_flags: <defaults>
</compile_context>

<pallas_src>
import functools

import jax
import jax.numpy as jnp
from jax.experimental import pallas as pl
from jax.experimental.pallas import tpu as pltpu


# ------------------------- fused LSTM-stack + FC kernel -------------------------
def make_health_kernel(num_layers, T, B, H):
    """Builds the fused kernel for a `num_layers`-deep LSTM + Linear head.

    Ref layout (inputs..., outputs..., scratch...):
      x_ref                       : (T*B, Din)   time-major, flattened (row = t*B + b)
      per layer l                 : wih_t (Din_l, 4H), whh_t (H, 4H), bias (1, 4H)
      fcw_ref, fcb_ref            : (H, O), (1, O)
      out_ref                     : (B, O)
      seq_scr (if num_layers > 1) : (T*B, H) VMEM scratch for the inter-layer sequence
    """

    def kernel(*refs):
        x_ref = refs[0]
        layer_refs = [
            (refs[1 + 3 * l], refs[2 + 3 * l], refs[3 + 3 * l]) for l in range(num_layers)
        ]
        fcw_ref = refs[1 + 3 * num_layers]
        fcb_ref = refs[2 + 3 * num_layers]
        out_ref = refs[3 + 3 * num_layers]
        seq_scr = refs[4 + 3 * num_layers] if num_layers > 1 else None

        h = jnp.zeros((B, H), jnp.float32)
        for l in range(num_layers):
            wih_ref, whh_ref, b_ref = layer_refs[l]
            is_last = l == num_layers - 1

            # Input sequence for this layer: original x, or previous layer's
            # hidden states (still resident in VMEM scratch).
            in_seq = x_ref[...] if l == 0 else seq_scr[...]

            # Hoisted input projection: ONE big matmul for the whole sequence
            # (no dependence on h, so it stays off the serial critical path).
            gates_x = (
                jnp.dot(in_seq, wih_ref[...], preferred_element_type=jnp.float32)
                + b_ref[...]
            )  # (T*B, 4H)

            whh = whh_ref[...]  # load recurrent weight once per layer
            h = jnp.zeros((B, H), jnp.float32)
            c = jnp.zeros((B, H), jnp.float32)

            # Fully unrolled recurrence (T static & small): only h @ W_hh per step.
            for t in range(T):
                gates = gates_x[t * B:(t + 1) * B, :] + jnp.dot(
                    h, whh, preferred_element_type=jnp.float32
                )  # (B, 4H)
                # Two full-width EUP ops instead of four 32-lane masked slices.
                sig = jax.nn.sigmoid(gates)
                th = jnp.tanh(gates)
                i_g = sig[:, 0 * H:1 * H]
                f_g = sig[:, 1 * H:2 * H]
                g_g = th[:, 2 * H:3 * H]
                o_g = sig[:, 3 * H:4 * H]
                c = f_g * c + i_g * g_g
                h = o_g * jnp.tanh(c)
                if not is_last:
                    # Intermediate layers feed the next layer; last layer only
                    # needs its final h, so skip the sequence writeback.
                    seq_scr[t * B:(t + 1) * B, :] = h

        # FC head on the final hidden state (already on-chip).
        out_ref[...] = (
            jnp.dot(h, fcw_ref[...], preferred_element_type=jnp.float32) + fcb_ref[...]
        )

    return kernel


# --------------------------------- wrapper ---------------------------------
@functools.partial(jax.jit, static_argnames=("hidden_size", "num_layers"))
def health_forward(x, params, hidden_size, num_layers):
    """x: (B, T, input_size) batch-first f32.  Returns (B, output_size)."""
    B, T, Din = x.shape
    H = hidden_size
    O = params["fc_w_t"].shape[1]

    # Time-major + flatten so the per-layer input projection is one 2-D matmul.
    x_flat = jnp.transpose(x, (1, 0, 2)).reshape(T * B, Din)

    inputs = [x_flat]
    for l in range(num_layers):
        wih_t, whh_t, b = params["lstm"][l]
        inputs += [wih_t, whh_t, b]
    inputs += [params["fc_w_t"], params["fc_b"]]

    vmem = pltpu.MemorySpace.VMEM
    scratch = [pltpu.VMEM((T * B, H), jnp.float32)] if num_layers > 1 else []

    return pl.pallas_call(
        make_health_kernel(num_layers, T, B, H),
        out_shape=jax.ShapeDtypeStruct((B, O), jnp.float32),
        in_specs=[pl.BlockSpec(memory_space=vmem)] * len(inputs),
        out_specs=pl.BlockSpec(memory_space=vmem),
        scratch_shapes=scratch,
    )(*inputs)


def prepare_params(raw, hidden_size, num_layers):
    """One-time host-side prep: transpose weights, combine biases."""
    H = hidden_size
    p = {"lstm": []}
    for l in range(num_layers):
        w_ih, w_hh, b_ih, b_hh = raw["lstm"][l]
        p["lstm"].append((w_ih.T, w_hh.T, (b_ih + b_hh).reshape(1, 4 * H)))
    p["fc_w_t"] = raw["fc_w"].T
    p["fc_b"] = raw["fc_b"].reshape(1, -1)
    return p


# ----------------------------- pure-JAX reference ------------------------------
def health_reference(x, raw_params, hidden_size, num_layers):
    B, T, _ = x.shape
    H = hidden_size
    seq = x
    for layer in range(num_layers):
        w_ih, w_hh, b_ih, b_hh = raw_params["lstm"][layer]
        h = jnp.zeros((B, H), jnp.float32)
        c = jnp.zeros((B, H), jnp.float32)
        outs = []
        for t in range(T):
            gates = seq[:, t, :] @ w_ih.T + h @ w_hh.T + b_ih + b_hh
            i = jax.nn.sigmoid(gates[:, 0 * H:1 * H])
            f = jax.nn.sigmoid(gates[:, 1 * H:2 * H])
            g = jnp.tanh(gates[:, 2 * H:3 * H])
            o = jax.nn.sigmoid(gates[:, 3 * H:4 * H])
            c = f * c + i * g
            h = o * jnp.tanh(c)
            outs.append(h)
        seq = jnp.stack(outs, axis=1)
    return seq[:, -1, :] @ raw_params["fc_w"].T + raw_params["fc_b"]


# ------------------------------- parameter init --------------------------------
def init_params(key, input_size, hidden_size, num_layers, output_size):
    """Mimics PyTorch defaults: uniform(-1/sqrt(H), 1/sqrt(H))."""
    params = {"lstm": []}
    k = 1.0 / jnp.sqrt(jnp.float32(hidden_size))
    for layer in range(num_layers):
        d_in = input_size if layer == 0 else hidden_size
        key, k1, k2, k3, k4 = jax.random.split(key, 5)
        w_ih = jax.random.uniform(k1, (4 * hidden_size, d_in), jnp.float32, -k, k)
        w_hh = jax.random.uniform(k2, (4 * hidden_size, hidden_size), jnp.float32, -k, k)
        b_ih = jax.random.uniform(k3, (4 * hidden_size,), jnp.float32, -k, k)
        b_hh = jax.random.uniform(k4, (4 * hidden_size,), jnp.float32, -k, k)
        params["lstm"].append((w_ih, w_hh, b_ih, b_hh))
    key, k1, k2 = jax.random.split(key, 3)
    params["fc_w"] = jax.random.uniform(k1, (output_size, hidden_size), jnp.float32, -k, k)
    params["fc_b"] = jax.random.uniform(k2, (output_size,), jnp.float32, -k, k)
    return params


if __name__ == "__main__":
    # Health(input_size=4, hidden_size=32, num_layer=2, output_size=1), B=2, T=8
    B, T = 2, 8
    INPUT_SIZE, HIDDEN_SIZE, NUM_LAYERS, OUTPUT_SIZE = 4, 32, 2, 1

    key = jax.random.PRNGKey(0)
    key, kx = jax.random.split(key)
    x = jax.random.normal(kx, (B, T, INPUT_SIZE), jnp.float32)
    raw_params = init_params(key, INPUT_SIZE, HIDDEN_SIZE, NUM_LAYERS, OUTPUT_SIZE)
    params = prepare_params(raw_params, HIDDEN_SIZE, NUM_LAYERS)

    out = health_forward(x, params, HIDDEN_SIZE, NUM_LAYERS)
    out = jax.block_until_ready(out)

    ref = health_reference(x, raw_params, HIDDEN_SIZE, NUM_LAYERS)
    assert out.shape == (B, OUTPUT_SIZE), out.shape
    assert jnp.allclose(out, ref, atol=1e-4, rtol=1e-4), (out, ref)

    print("KERNEL_OK")
</pallas_src>

<mosaic_0001>
module attributes {stable_mosaic.version = 11 : i64} {
  func.func @kernel(%arg0: memref<16x4xf32, #tpu.memory_space<vmem>>, %arg1: memref<4x128xf32, #tpu.memory_space<vmem>>, %arg2: memref<32x128xf32, #tpu.memory_space<vmem>>, %arg3: memref<1x128xf32, #tpu.memory_space<vmem>>, %arg4: memref<32x128xf32, #tpu.memory_space<vmem>>, %arg5: memref<32x128xf32, #tpu.memory_space<vmem>>, %arg6: memref<1x128xf32, #tpu.memory_space<vmem>>, %arg7: memref<32x1xf32, #tpu.memory_space<vmem>>, %arg8: memref<1x1xf32, #tpu.memory_space<vmem>>, %arg9: memref<2x1xf32, #tpu.memory_space<vmem>>, %arg10: memref<16x32xf32, #tpu.memory_space<vmem>>) attributes {dimension_semantics = [], scalar_prefetch = 0 : i64, scratch_operands = 1 : i64, tpu.core_type = #tpu.core_type<tc>} {
    %c0 = arith.constant 0 : index
    %c0_0 = arith.constant 0 : index
    %0 = vector.load %arg0[%c0, %c0_0] : memref<16x4xf32, #tpu.memory_space<vmem>>, vector<16x4xf32>
    %c0_1 = arith.constant 0 : index
    %c0_2 = arith.constant 0 : index
    %1 = vector.load %arg1[%c0_1, %c0_2] : memref<4x128xf32, #tpu.memory_space<vmem>>, vector<4x128xf32>
    %cst = arith.constant dense<0.000000e+00> : vector<16x128xf32>
    %2 = tpu.matmul %0, %1, %cst {dimension_numbers = #tpu.dot_dimension_numbers<[1], [0], [0], [1], [0, 0, 1, 1], [], []>} : vector<16x4xf32>, vector<4x128xf32>, vector<16x128xf32> -> vector<16x128xf32>
    %c0_3 = arith.constant 0 : index
    %c0_4 = arith.constant 0 : index
    %3 = vector.load %arg3[%c0_3, %c0_4] : memref<1x128xf32, #tpu.memory_space<vmem>>, vector<1x128xf32>
    %4 = vector.broadcast %3 : vector<1x128xf32> to vector<16x128xf32>
    %5 = arith.addf %2, %4 : vector<16x128xf32>
    %c0_5 = arith.constant 0 : index
    %c0_6 = arith.constant 0 : index
    %6 = vector.load %arg2[%c0_5, %c0_6] : memref<32x128xf32, #tpu.memory_space<vmem>>, vector<32x128xf32>
    %cst_7 = arith.constant 0.000000e+00 : f32
    %7 = vector.broadcast %cst_7 : f32 to vector<2x32xf32>
    %cst_8 = arith.constant 0.000000e+00 : f32
    %8 = vector.broadcast %cst_8 : f32 to vector<2x32xf32>
    %9 = vector.extract_strided_slice %5 {offsets = [0, 0], sizes = [2, 128], strides = [1, 1]} : vector<16x128xf32> to vector<2x128xf32>
    %cst_9 = arith.constant dense<0.000000e+00> : vector<2x128xf32>
    %10 = tpu.matmul %7, %6, %cst_9 {dimension_numbers = #tpu.dot_dimension_numbers<[1], [0], [0], [1], [0, 0, 1, 1], [], []>} : vector<2x32xf32>, vector<32x128xf32>, vector<2x128xf32> -> vector<2x128xf32>
    %11 = arith.addf %9, %10 : vector<2x128xf32>
    %12 = arith.negf %11 : vector<2x128xf32>
    %13 = math.exp %12 : vector<2x128xf32>
    %cst_10 = arith.constant 1.000000e+00 : f32
    %14 = vector.broadcast %cst_10 : f32 to vector<2x128xf32>
    %15 = arith.addf %14, %13 : vector<2x128xf32>
    %16 = arith.divf %14, %15 : vector<2x128xf32>
    %17 = math.tanh %11 : vector<2x128xf32>
    %18 = vector.extract_strided_slice %16 {offsets = [0, 0], sizes = [2, 32], strides = [1, 1]} : vector<2x128xf32> to vector<2x32xf32>
    %19 = vector.extract_strided_slice %16 {offsets = [0, 32], sizes = [2, 32], strides = [1, 1]} : vector<2x128xf32> to vector<2x32xf32>
    %20 = vector.extract_strided_slice %17 {offsets = [0, 64], sizes = [2, 32], strides = [1, 1]} : vector<2x128xf32> to vector<2x32xf32>
    %21 = vector.extract_strided_slice %16 {offsets = [0, 96], sizes = [2, 32], strides = [1, 1]} : vector<2x128xf32> to vector<2x32xf32>
    %22 = arith.mulf %19, %8 : vector<2x32xf32>
    %23 = arith.mulf %18, %20 : vector<2x32xf32>
    %24 = arith.addf %22, %23 : vector<2x32xf32>
    %25 = math.tanh %24 : vector<2x32xf32>
    %26 = arith.mulf %21, %25 : vector<2x32xf32>
    %c0_11 = arith.constant 0 : index
    %c0_12 = arith.constant 0 : index
    %27 = vector.load %arg10[%c0_11, %c0_12] : memref<16x32xf32, #tpu.memory_space<vmem>>, vector<2x32xf32>
    tpu.vector_store %arg10[%c0_11, %c0_12], %26 {strides = array<i32>} : memref<16x32xf32, #tpu.memory_space<vmem>>, vector<2x32xf32>,
    %28 = vector.extract_strided_slice %5 {offsets = [2, 0], sizes = [2, 128], strides = [1, 1]} : vector<16x128xf32> to vector<2x128xf32>
    %cst_13 = arith.constant dense<0.000000e+00> : vector<2x128xf32>
    %29 = tpu.matmul %26, %6, %cst_13 {dimension_numbers = #tpu.dot_dimension_numbers<[1], [0], [0], [1], [0, 0, 1, 1], [], []>} : vector<2x32xf32>, vector<32x128xf32>, vector<2x128xf32> -> vector<2x128xf32>
    %30 = arith.addf %28, %29 : vector<2x128xf32>
    %31 = arith.negf %30 : vector<2x128xf32>
    %32 = math.exp %31 : vector<2x128xf32>
    %cst_14 = arith.constant 1.000000e+00 : f32
    %33 = vector.broadcast %cst_14 : f32 to vector<2x128xf32>
    %34 = arith.addf %33, %32 : vector<2x128xf32>
    %35 = arith.divf %33, %34 : vector<2x128xf32>
    %36 = math.tanh %30 : vector<2x128xf32>
    %37 = vector.extract_strided_slice %35 {offsets = [0, 0], sizes = [2, 32], strides = [1, 1]} : vector<2x128xf32> to vector<2x32xf32>
    %38 = vector.extract_strided_slice %35 {offsets = [0, 32], sizes = [2, 32], strides = [1, 1]} : vector<2x128xf32> to vector<2x32xf32>
    %39 = vector.extract_strided_slice %36 {offsets = [0, 64], sizes = [2, 32], strides = [1, 1]} : vector<2x128xf32> to vector<2x32xf32>
    %40 = vector.extract_strided_slice %35 {offsets = [0, 96], sizes = [2, 32], strides = [1, 1]} : vector<2x128xf32> to vector<2x32xf32>
    %41 = arith.mulf %38, %24 : vector<2x32xf32>
    %42 = arith.mulf %37, %39 : vector<2x32xf32>
    %43 = arith.addf %41, %42 : vector<2x32xf32>
    %44 = math.tanh %43 : vector<2x32xf32>
    %45 = arith.mulf %40, %44 : vector<2x32xf32>
    %c2 = arith.constant 2 : index
    %c0_15 = arith.constant 0 : index
    %46 = vector.load %arg10[%c2, %c0_15] : memref<16x32xf32, #tpu.memory_space<vmem>>, vector<2x32xf32>
    tpu.vector_store %arg10[%c2, %c0_15], %45 {strides = array<i32>} : memref<16x32xf32, #tpu.memory_space<vmem>>, vector<2x32xf32>,
    %47 = vector.extract_strided_slice %5 {offsets = [4, 0], sizes = [2, 128], strides = [1, 1]} : vector<16x128xf32> to vector<2x128xf32>
    %cst_16 = arith.constant dense<0.000000e+00> : vector<2x128xf32>
    %48 = tpu.matmul %45, %6, %cst_16 {dimension_numbers = #tpu.dot_dimension_numbers<[1], [0], [0], [1], [0, 0, 1, 1], [], []>} : vector<2x32xf32>, vector<32x128xf32>, vector<2x128xf32> -> vector<2x128xf32>
    %49 = arith.addf %47, %48 : vector<2x128xf32>
    %50 = arith.negf %49 : vector<2x128xf32>
    %51 = math.exp %50 : vector<2x128xf32>
    %cst_17 = arith.constant 1.000000e+00 : f32
    %52 = vector.broadcast %cst_17 : f32 to vector<2x128xf32>
    %53 = arith.addf %52, %51 : vector<2x128xf32>
    %54 = arith.divf %52, %53 : vector<2x128xf32>
    %55 = math.tanh %49 : vector<2x128xf32>
    %56 = vector.extract_strided_slice %54 {offsets = [0, 0], sizes = [2, 32], strides = [1, 1]} : vector<2x128xf32> to vector<2x32xf32>
    %57 = vector.extract_strided_slice %54 {offsets = [0, 32], sizes = [2, 32], strides = [1, 1]} : vector<2x128xf32> to vector<2x32xf32>
    %58 = vector.extract_strided_slice %55 {offsets = [0, 64], sizes = [2, 32], strides = [1, 1]} : vector<2x128xf32> to vector<2x32xf32>
    %59 = vector.extract_strided_slice %54 {offsets = [0, 96], sizes = [2, 32], strides = [1, 1]} : vector<2x128xf32> to vector<2x32xf32>
    %60 = arith.mulf %57, %43 : vector<2x32xf32>
    %61 = arith.mulf %56, %58 : vector<2x32xf32>
    %62 = arith.addf %60, %61 : vector<2x32xf32>
    %63 = math.tanh %62 : vector<2x32xf32>
    %64 = arith.mulf %59, %63 : vector<2x32xf32>
    %c4 = arith.constant 4 : index
    %c0_18 = arith.constant 0 : index
    %65 = vector.load %arg10[%c4, %c0_18] : memref<16x32xf32, #tpu.memory_space<vmem>>, vector<2x32xf32>
    tpu.vector_store %arg10[%c4, %c0_18], %64 {strides = array<i32>} : memref<16x32xf32, #tpu.memory_space<vmem>>, vector<2x32xf32>,
    %66 = vector.extract_strided_slice %5 {offsets = [6, 0], sizes = [2, 128], strides = [1, 1]} : vector<16x128xf32> to vector<2x128xf32>
    %cst_19 = arith.constant dense<0.000000e+00> : vector<2x128xf32>
    %67 = tpu.matmul %64, %6, %cst_19 {dimension_numbers = #tpu.dot_dimension_numbers<[1], [0], [0], [1], [0, 0, 1, 1], [], []>} : vector<2x32xf32>, vector<32x128xf32>, vector<2x128xf32> -> vector<2x128xf32>
    %68 = arith.addf %66, %67 : vector<2x128xf32>
    %69 = arith.negf %68 : vector<2x128xf32>
    %70 = math.exp %69 : vector<2x128xf32>
    %cst_20 = arith.constant 1.000000e+00 : f32
    %71 = vector.broadcast %cst_20 : f32 to vector<2x128xf32>
    %72 = arith.addf %71, %70 : vector<2x128xf32>
    %73 = arith.divf %71, %72 : vector<2x128xf32>
    %74 = math.tanh %68 : vector<2x128xf32>
    %75 = vector.extract_strided_slice %73 {offsets = [0, 0], sizes = [2, 32], strides = [1, 1]} : vector<2x128xf32> to vector<2x32xf32>
    %76 = vector.extract_strided_slice %73 {offsets = [0, 32], sizes = [2, 32], strides = [1, 1]} : vector<2x128xf32> to vector<2x32xf32>
    %77 = vector.extract_strided_slice %74 {offsets = [0, 64], sizes = [2, 32], strides = [1, 1]} : vector<2x128xf32> to vector<2x32xf32>
    %78 = vector.extract_strided_slice %73 {offsets = [0, 96], sizes = [2, 32], strides = [1, 1]} : vector<2x128xf32> to vector<2x32xf32>
    %79 = arith.mulf %76, %62 : vector<2x32xf32>
    %80 = arith.mulf %75, %77 : vector<2x32xf32>
    %81 = arith.addf %79, %80 : vector<2x32xf32>
    %82 = math.tanh %81 : vector<2x32xf32>
    %83 = arith.mulf %78, %82 : vector<2x32xf32>
    %c6 = arith.constant 6 : index
    %c0_21 = arith.constant 0 : index
    %84 = vector.load %arg10[%c6, %c0_21] : memref<16x32xf32, #tpu.memory_space<vmem>>, vector<2x32xf32>
    tpu.vector_store %arg10[%c6, %c0_21], %83 {strides = array<i32>} : memref<16x32xf32, #tpu.memory_space<vmem>>, vector<2x32xf32>,
    %85 = vector.extract_strided_slice %5 {offsets = [8, 0], sizes = [2, 128], strides = [1, 1]} : vector<16x128xf32> to vector<2x128xf32>
    %cst_22 = arith.constant dense<0.000000e+00> : vector<2x128xf32>
    %86 = tpu.matmul %83, %6, %cst_22 {dimension_numbers = #tpu.dot_dimension_numbers<[1], [0], [0], [1], [0, 0, 1, 1], [], []>} : vector<2x32xf32>, vector<32x128xf32>, vector<2x128xf32> -> vector<2x128xf32>
    %87 = arith.addf %85, %86 : vector<2x128xf32>
    %88 = arith.negf %87 : vector<2x128xf32>
    %89 = math.exp %88 : vector<2x128xf32>
    %cst_23 = arith.constant 1.000000e+00 : f32
    %90 = vector.broadcast %cst_23 : f32 to vector<2x128xf32>
    %91 = arith.addf %90, %89 : vector<2x128xf32>
    %92 = arith.divf %90, %91 : vector<2x128xf32>
    %93 = math.tanh %87 : vector<2x128xf32>
    %94 = vector.extract_strided_slice %92 {offsets = [0, 0], sizes = [2, 32], strides = [1, 1]} : vector<2x128xf32> to vector<2x32xf32>
    %95 = vector.extract_strided_slice %92 {offsets = [0, 32], sizes = [2, 32], strides = [1, 1]} : vector<2x128xf32> to vector<2x32xf32>
    %96 = vector.extract_strided_slice %93 {offsets = [0, 64], sizes = [2, 32], strides = [1, 1]} : vector<2x128xf32> to vector<2x32xf32>
    %97 = vector.extract_strided_slice %92 {offsets = [0, 96], sizes = [2, 32], strides = [1, 1]} : vector<2x128xf32> to vector<2x32xf32>
    %98 = arith.mulf %95, %81 : vector<2x32xf32>
    %99 = arith.mulf %94, %96 : vector<2x32xf32>
    %100 = arith.addf %98, %99 : vector<2x32xf32>
    %101 = math.tanh %100 : vector<2x32xf32>
    %102 = arith.mulf %97, %101 : vector<2x32xf32>
    %c8 = arith.constant 8 : index
    %c0_24 = arith.constant 0 : index
    %103 = vector.load %arg10[%c8, %c0_24] : memref<16x32xf32, #tpu.memory_space<vmem>>, vector<2x32xf32>
    tpu.vector_store %arg10[%c8, %c0_24], %102 {strides = array<i32>} : memref<16x32xf32, #tpu.memory_space<vmem>>, vector<2x32xf32>,
    %104 = vector.extract_strided_slice %5 {offsets = [10, 0], sizes = [2, 128], strides = [1, 1]} : vector<16x128xf32> to vector<2x128xf32>
    %cst_25 = arith.constant dense<0.000000e+00> : vector<2x128xf32>
    %105 = tpu.matmul %102, %6, %cst_25 {dimension_numbers = #tpu.dot_dimension_numbers<[1], [0], [0], [1], [0, 0, 1, 1], [], []>} : vector<2x32xf32>, vector<32x128xf32>, vector<2x128xf32> -> vector<2x128xf32>
    %106 = arith.addf %104, %105 : vector<2x128xf32>
    %107 = arith.negf %106 : vector<2x128xf32>
    %108 = math.exp %107 : vector<2x128xf32>
    %cst_26 = arith.constant 1.000000e+00 : f32
    %109 = vector.broadcast %cst_26 : f32 to vector<2x128xf32>
    %110 = arith.addf %109, %108 : vector<2x128xf32>
    %111 = arith.divf %109, %110 : vector<2x128xf32>
    %112 = math.tanh %106 : vector<2x128xf32>
    %113 = vector.extract_strided_slice %111 {offsets = [0, 0], sizes = [2, 32], strides = [1, 1]} : vector<2x128xf32> to vector<2x32xf32>
    %114 = vector.extract_strided_slice %111 {offsets = [0, 32], sizes = [2, 32], strides = [1, 1]} : vector<2x128xf32> to vector<2x32xf32>
    %115 = vector.extract_strided_slice %112 {offsets = [0, 64], sizes = [2, 32], strides = [1, 1]} : vector<2x128xf32> to vector<2x32xf32>
    %116 = vector.extract_strided_slice %111 {offsets = [0, 96], sizes = [2, 32], strides = [1, 1]} : vector<2x128xf32> to vector<2x32xf32>
    %117 = arith.mulf %114, %100 : vector<2x32xf32>
    %118 = arith.mulf %113, %115 : vector<2x32xf32>
    %119 = arith.addf %117, %118 : vector<2x32xf32>
    %120 = math.tanh %119 : vector<2x32xf32>
    %121 = arith.mulf %116, %120 : vector<2x32xf32>
    %c10 = arith.constant 10 : index
    %c0_27 = arith.constant 0 : index
    %122 = vector.load %arg10[%c10, %c0_27] : memref<16x32xf32, #tpu.memory_space<vmem>>, vector<2x32xf32>
    tpu.vector_store %arg10[%c10, %c0_27], %121 {strides = array<i32>} : memref<16x32xf32, #tpu.memory_space<vmem>>, vector<2x32xf32>,
    %123 = vector.extract_strided_slice %5 {offsets = [12, 0], sizes = [2, 128], strides = [1, 1]} : vector<16x128xf32> to vector<2x128xf32>
    %cst_28 = arith.constant dense<0.000000e+00> : vector<2x128xf32>
    %124 = tpu.matmul %121, %6, %cst_28 {dimension_numbers = #tpu.dot_dimension_numbers<[1], [0], [0], [1], [0, 0, 1, 1], [], []>} : vector<2x32xf32>, vector<32x128xf32>, vector<2x128xf32> -> vector<2x128xf32>
    %125 = arith.addf %123, %124 : vector<2x128xf32>
    %126 = arith.negf %125 : vector<2x128xf32>
    %127 = math.exp %126 : vector<2x128xf32>
    %cst_29 = arith.constant 1.000000e+00 : f32
    %128 = vector.broadcast %cst_29 : f32 to vector<2x128xf32>
    %129 = arith.addf %128, %127 : vector<2x128xf32>
    %130 = arith.divf %128, %129 : vector<2x128xf32>
    %131 = math.tanh %125 : vector<2x128xf32>
    %132 = vector.extract_strided_slice %130 {offsets = [0, 0], sizes = [2, 32], strides = [1, 1]} : vector<2x128xf32> to vector<2x32xf32>
    %133 = vector.extract_strided_slice %130 {offsets = [0, 32], sizes = [2, 32], strides = [1, 1]} : vector<2x128xf32> to vector<2x32xf32>
    %134 = vector.extract_strided_slice %131 {offsets = [0, 64], sizes = [2, 32], strides = [1, 1]} : vector<2x128xf32> to vector<2x32xf32>
    %135 = vector.extract_strided_slice %130 {offsets = [0, 96], sizes = [2, 32], strides = [1, 1]} : vector<2x128xf32> to vector<2x32xf32>
    %136 = arith.mulf %133, %119 : vector<2x32xf32>
    %137 = arith.mulf %132, %134 : vector<2x32xf32>
    %138 = arith.addf %136, %137 : vector<2x32xf32>
    %139 = math.tanh %138 : vector<2x32xf32>
    %140 = arith.mulf %135, %139 : vector<2x32xf32>
    %c12 = arith.constant 12 : index
    %c0_30 = arith.constant 0 : index
    %141 = vector.load %arg10[%c12, %c0_30] : memref<16x32xf32, #tpu.memory_space<vmem>>, vector<2x32xf32>
    tpu.vector_store %arg10[%c12, %c0_30], %140 {strides = array<i32>} : memref<16x32xf32, #tpu.memory_space<vmem>>, vector<2x32xf32>,
    %142 = vector.extract_strided_slice %5 {offsets = [14, 0], sizes = [2, 128], strides = [1, 1]} : vector<16x128xf32> to vector<2x128xf32>
    %cst_31 = arith.constant dense<0.000000e+00> : vector<2x128xf32>
    %143 = tpu.matmul %140, %6, %cst_31 {dimension_numbers = #tpu.dot_dimension_numbers<[1], [0], [0], [1], [0, 0, 1, 1], [], []>} : vector<2x32xf32>, vector<32x128xf32>, vector<2x128xf32> -> vector<2x128xf32>
    %144 = arith.addf %142, %143 : vector<2x128xf32>
    %145 = arith.negf %144 : vector<2x128xf32>
    %146 = math.exp %145 : vector<2x128xf32>
    %cst_32 = arith.constant 1.000000e+00 : f32
    %147 = vector.broadcast %cst_32 : f32 to vector<2x128xf32>
    %148 = arith.addf %147, %146 : vector<2x128xf32>
    %149 = arith.divf %147, %148 : vector<2x128xf32>
    %150 = math.tanh %144 : vector<2x128xf32>
    %151 = vector.extract_strided_slice %149 {offsets = [0, 0], sizes = [2, 32], strides = [1, 1]} : vector<2x128xf32> to vector<2x32xf32>
    %152 = vector.extract_strided_slice %149 {offsets = [0, 32], sizes = [2, 32], strides = [1, 1]} : vector<2x128xf32> to vector<2x32xf32>
    %153 = vector.extract_strided_slice %150 {offsets = [0, 64], sizes = [2, 32], strides = [1, 1]} : vector<2x128xf32> to vector<2x32xf32>
    %154 = vector.extract_strided_slice %149 {offsets = [0, 96], sizes = [2, 32], strides = [1, 1]} : vector<2x128xf32> to vector<2x32xf32>
    %155 = arith.mulf %152, %138 : vector<2x32xf32>
    %156 = arith.mulf %151, %153 : vector<2x32xf32>
    %157 = arith.addf %155, %156 : vector<2x32xf32>
    %158 = math.tanh %157 : vector<2x32xf32>
    %159 = arith.mulf %154, %158 : vector<2x32xf32>
    %c14 = arith.constant 14 : index
    %c0_33 = arith.constant 0 : index
    %160 = vector.load %arg10[%c14, %c0_33] : memref<16x32xf32, #tpu.memory_space<vmem>>, vector<2x32xf32>
    tpu.vector_store %arg10[%c14, %c0_33], %159 {strides = array<i32>} : memref<16x32xf32, #tpu.memory_space<vmem>>, vector<2x32xf32>,
    %c0_34 = arith.constant 0 : index
    %c0_35 = arith.constant 0 : index
    %161 = vector.load %arg10[%c0_34, %c0_35] : memref<16x32xf32, #tpu.memory_space<vmem>>, vector<16x32xf32>
    %c0_36 = arith.constant 0 : index
    %c0_37 = arith.constant 0 : index
    %162 = vector.load %arg4[%c0_36, %c0_37] : memref<32x128xf32, #tpu.memory_space<vmem>>, vector<32x128xf32>
    %cst_38 = arith.constant dense<0.000000e+00> : vector<16x128xf32>
    %163 = tpu.matmul %161, %162, %cst_38 {dimension_numbers = #tpu.dot_dimension_numbers<[1], [0], [0], [1], [0, 0, 1, 1], [], []>} : vector<16x32xf32>, vector<32x128xf32>, vector<16x128xf32> -> vector<16x128xf32>
    %c0_39 = arith.constant 0 : index
    %c0_40 = arith.constant 0 : index
    %164 = vector.load %arg6[%c0_39, %c0_40] : memref<1x128xf32, #tpu.memory_space<vmem>>, vector<1x128xf32>
    %165 = vector.broadcast %164 : vector<1x128xf32> to vector<16x128xf32>
    %166 = arith.addf %163, %165 : vector<16x128xf32>
    %c0_41 = arith.constant 0 : index
    %c0_42 = arith.constant 0 : index
    %167 = vector.load %arg5[%c0_41, %c0_42] : memref<32x128xf32, #tpu.memory_space<vmem>>, vector<32x128xf32>
    %cst_43 = arith.constant 0.000000e+00 : f32
    %168 = vector.broadcast %cst_43 : f32 to vector<2x32xf32>
    %cst_44 = arith.constant 0.000000e+00 : f32
    %169 = vector.broadcast %cst_44 : f32 to vector<2x32xf32>
    %170 = vector.extract_strided_slice %166 {offsets = [0, 0], sizes = [2, 128], strides = [1, 1]} : vector<16x128xf32> to vector<2x128xf32>
    %cst_45 = arith.constant dense<0.000000e+00> : vector<2x128xf32>
    %171 = tpu.matmul %168, %167, %cst_45 {dimension_numbers = #tpu.dot_dimension_numbers<[1], [0], [0], [1], [0, 0, 1, 1], [], []>} : vector<2x32xf32>, vector<32x128xf32>, vector<2x128xf32> -> vector<2x128xf32>
    %172 = arith.addf %170, %171 : vector<2x128xf32>
    %173 = arith.negf %172 : vector<2x128xf32>
    %174 = math.exp %173 : vector<2x128xf32>
    %cst_46 = arith.constant 1.000000e+00 : f32
    %175 = vector.broadcast %cst_46 : f32 to vector<2x128xf32>
    %176 = arith.addf %175, %174 : vector<2x128xf32>
    %177 = arith.divf %175, %176 : vector<2x128xf32>
    %178 = math.tanh %172 : vector<2x128xf32>
    %179 = vector.extract_strided_slice %177 {offsets = [0, 0], sizes = [2, 32], strides = [1, 1]} : vector<2x128xf32> to vector<2x32xf32>
    %180 = vector.extract_strided_slice %177 {offsets = [0, 32], sizes = [2, 32], strides = [1, 1]} : vector<2x128xf32> to vector<2x32xf32>
    %181 = vector.extract_strided_slice %178 {offsets = [0, 64], sizes = [2, 32], strides = [1, 1]} : vector<2x128xf32> to vector<2x32xf32>
    %182 = vector.extract_strided_slice %177 {offsets = [0, 96], sizes = [2, 32], strides = [1, 1]} : vector<2x128xf32> to vector<2x32xf32>
    %183 = arith.mulf %180, %169 : vector<2x32xf32>
    %184 = arith.mulf %179, %181 : vector<2x32xf32>
    %185 = arith.addf %183, %184 : vector<2x32xf32>
    %186 = math.tanh %185 : vector<2x32xf32>
    %187 = arith.mulf %182, %186 : vector<2x32xf32>
    %188 = vector.extract_strided_slice %166 {offsets = [2, 0], sizes = [2, 128], strides = [1, 1]} : vector<16x128xf32> to vector<2x128xf32>
    %cst_47 = arith.constant dense<0.000000e+00> : vector<2x128xf32>
    %189 = tpu.matmul %187, %167, %cst_47 {dimension_numbers = #tpu.dot_dimension_numbers<[1], [0], [0], [1], [0, 0, 1, 1], [], []>} : vector<2x32xf32>, vector<32x128xf32>, vector<2x128xf32> -> vector<2x128xf32>
    %190 = arith.addf %188, %189 : vector<2x128xf32>
    %191 = arith.negf %190 : vector<2x128xf32>
    %192 = math.exp %191 : vector<2x128xf32>
    %cst_48 = arith.constant 1.000000e+00 : f32
    %193 = vector.broadcast %cst_48 : f32 to vector<2x128xf32>
    %194 = arith.addf %193, %192 : vector<2x128xf32>
    %195 = arith.divf %193, %194 : vector<2x128xf32>
    %196 = math.tanh %190 : vector<2x128xf32>
    %197 = vector.extract_strided_slice %195 {offsets = [0, 0], sizes = [2, 32], strides = [1, 1]} : vector<2x128xf32> to vector<2x32xf32>
    %198 = vector.extract_strided_slice %195 {offsets = [0, 32], sizes = [2, 32], strides = [1, 1]} : vector<2x128xf32> to vector<2x32xf32>
    %199 = vector.extract_strided_slice %196 {offsets = [0, 64], sizes = [2, 32], strides = [1, 1]} : vector<2x128xf32> to vector<2x32xf32>
    %200 = vector.extract_strided_slice %195 {offsets = [0, 96], sizes = [2, 32], strides = [1, 1]} : vector<2x128xf32> to vector<2x32xf32>
    %201 = arith.mulf %198, %185 : vector<2x32xf32>
    %202 = arith.mulf %197, %199 : vector<2x32xf32>
    %203 = arith.addf %201, %202 : vector<2x32xf32>
    %204 = math.tanh %203 : vector<2x32xf32>
    %205 = arith.mulf %200, %204 : vector<2x32xf32>
    %206 = vector.extract_strided_slice %166 {offsets = [4, 0], sizes = [2, 128], strides = [1, 1]} : vector<16x128xf32> to vector<2x128xf32>
    %cst_49 = arith.constant dense<0.000000e+00> : vector<2x128xf32>
    %207 = tpu.matmul %205, %167, %cst_49 {dimension_numbers = #tpu.dot_dimension_numbers<[1], [0], [0], [1], [0, 0, 1, 1], [], []>} : vector<2x32xf32>, vector<32x128xf32>, vector<2x128xf32> -> vector<2x128xf32>
    %208 = arith.addf %206, %207 : vector<2x128xf32>
    %209 = arith.negf %208 : vector<2x128xf32>
    %210 = math.exp %209 : vector<2x128xf32>
    %cst_50 = arith.constant 1.000000e+00 : f32
    %211 = vector.broadcast %cst_50 : f32 to vector<2x128xf32>
    %212 = arith.addf %211, %210 : vector<2x128xf32>
    %213 = arith.divf %211, %212 : vector<2x128xf32>
    %214 = math.tanh %208 : vector<2x128xf32>
    %215 = vector.extract_strided_slice %213 {offsets = [0, 0], sizes = [2, 32], strides = [1, 1]} : vector<2x128xf32> to vector<2x32xf32>
    %216 = vector.extract_strided_slice %213 {offsets = [0, 32], sizes = [2, 32], strides = [1, 1]} : vector<2x128xf32> to vector<2x32xf32>
    %217 = vector.extract_strided_slice %214 {offsets = [0, 64], sizes = [2, 32], strides = [1, 1]} : vector<2x128xf32> to vector<2x32xf32>
    %218 = vector.extract_strided_slice %213 {offsets = [0, 96], sizes = [2, 32], strides = [1, 1]} : vector<2x128xf32> to vector<2x32xf32>
    %219 = arith.mulf %216, %203 : vector<2x32xf32>
    %220 = arith.mulf %215, %217 : vector<2x32xf32>
    %221 = arith.addf %219, %220 : vector<2x32xf32>
    %222 = math.tanh %221 : vector<2x32xf32>
    %223 = arith.mulf %218, %222 : vector<2x32xf32>
    %224 = vector.extract_strided_slice %166 {offsets = [6, 0], sizes = [2, 128], strides = [1, 1]} : vector<16x128xf32> to vector<2x128xf32>
    %cst_51 = arith.constant dense<0.000000e+00> : vector<2x128xf32>
    %225 = tpu.matmul %223, %167, %cst_51 {dimension_numbers = #tpu.dot_dimension_numbers<[1], [0], [0], [1], [0, 0, 1, 1], [], []>} : vector<2x32xf32>, vector<32x128xf32>, vector<2x128xf32> -> vector<2x128xf32>
    %226 = arith.addf %224, %225 : vector<2x128xf32>
    %227 = arith.negf %226 : vector<2x128xf32>
    %228 = math.exp %227 : vector<2x128xf32>
    %cst_52 = arith.constant 1.000000e+00 : f32
    %229 = vector.broadcast %cst_52 : f32 to vector<2x128xf32>
    %230 = arith.addf %229, %228 : vector<2x128xf32>
    %231 = arith.divf %229, %230 : vector<2x128xf32>
    %232 = math.tanh %226 : vector<2x128xf32>
    %233 = vector.extract_strided_slice %231 {offsets = [0, 0], sizes = [2, 32], strides = [1, 1]} : vector<2x128xf32> to vector<2x32xf32>
    %234 = vector.extract_strided_slice %231 {offsets = [0, 32], sizes = [2, 32], strides = [1, 1]} : vector<2x128xf32> to vector<2x32xf32>
    %235 = vector.extract_strided_slice %232 {offsets = [0, 64], sizes = [2, 32], strides = [1, 1]} : vector<2x128xf32> to vector<2x32xf32>
    %236 = vector.extract_strided_slice %231 {offsets = [0, 96], sizes = [2, 32], strides = [1, 1]} : vector<2x128xf32> to vector<2x32xf32>
    %237 = arith.mulf %234, %221 : vector<2x32xf32>
    %238 = arith.mulf %233, %235 : vector<2x32xf32>
    %239 = arith.addf %237, %238 : vector<2x32xf32>
    %240 = math.tanh %239 : vector<2x32xf32>
    %241 = arith.mulf %236, %240 : vector<2x32xf32>
    %242 = vector.extract_strided_slice %166 {offsets = [8, 0], sizes = [2, 128], strides = [1, 1]} : vector<16x128xf32> to vector<2x128xf32>
    %cst_53 = arith.constant dense<0.000000e+00> : vector<2x128xf32>
    %243 = tpu.matmul %241, %167, %cst_53 {dimension_numbers = #tpu.dot_dimension_numbers<[1], [0], [0], [1], [0, 0, 1, 1], [], []>} : vector<2x32xf32>, vector<32x128xf32>, vector<2x128xf32> -> vector<2x128xf32>
    %244 = arith.addf %242, %243 : vector<2x128xf32>
    %245 = arith.negf %244 : vector<2x128xf32>
    %246 = math.exp %245 : vector<2x128xf32>
    %cst_54 = arith.constant 1.000000e+00 : f32
    %247 = vector.broadcast %cst_54 : f32 to vector<2x128xf32>
    %248 = arith.addf %247, %246 : vector<2x128xf32>
    %249 = arith.divf %247, %248 : vector<2x128xf32>
    %250 = math.tanh %244 : vector<2x128xf32>
    %251 = vector.extract_strided_slice %249 {offsets = [0, 0], sizes = [2, 32], strides = [1, 1]} : vector<2x128xf32> to vector<2x32xf32>
    %252 = vector.extract_strided_slice %249 {offsets = [0, 32], sizes = [2, 32], strides = [1, 1]} : vector<2x128xf32> to vector<2x32xf32>
    %253 = vector.extract_strided_slice %250 {offsets = [0, 64], sizes = [2, 32], strides = [1, 1]} : vector<2x128xf32> to vector<2x32xf32>
    %254 = vector.extract_strided_slice %249 {offsets = [0, 96], sizes = [2, 32], strides = [1, 1]} : vector<2x128xf32> to vector<2x32xf32>
    %255 = arith.mulf %252, %239 : vector<2x32xf32>
    %256 = arith.mulf %251, %253 : vector<2x32xf32>
    %257 = arith.addf %255, %256 : vector<2x32xf32>
    %258 = math.tanh %257 : vector<2x32xf32>
    %259 = arith.mulf %254, %258 : vector<2x32xf32>
    %260 = vector.extract_strided_slice %166 {offsets = [10, 0], sizes = [2, 128], strides = [1, 1]} : vector<16x128xf32> to vector<2x128xf32>
    %cst_55 = arith.constant dense<0.000000e+00> : vector<2x128xf32>
    %261 = tpu.matmul %259, %167, %cst_55 {dimension_numbers = #tpu.dot_dimension_numbers<[1], [0], [0], [1], [0, 0, 1, 1], [], []>} : vector<2x32xf32>, vector<32x128xf32>, vector<2x128xf32> -> vector<2x128xf32>
    %262 = arith.addf %260, %261 : vector<2x128xf32>
    %263 = arith.negf %262 : vector<2x128xf32>
    %264 = math.exp %263 : vector<2x128xf32>
    %cst_56 = arith.constant 1.000000e+00 : f32
    %265 = vector.broadcast %cst_56 : f32 to vector<2x128xf32>
    %266 = arith.addf %265, %264 : vector<2x128xf32>
    %267 = arith.divf %265, %266 : vector<2x128xf32>
    %268 = math.tanh %262 : vector<2x128xf32>
    %269 = vector.extract_strided_slice %267 {offsets = [0, 0], sizes = [2, 32], strides = [1, 1]} : vector<2x128xf32> to vector<2x32xf32>
    %270 = vector.extract_strided_slice %267 {offsets = [0, 32], sizes = [2, 32], strides = [1, 1]} : vector<2x128xf32> to vector<2x32xf32>
    %271 = vector.extract_strided_slice %268 {offsets = [0, 64], sizes = [2, 32], strides = [1, 1]} : vector<2x128xf32> to vector<2x32xf32>
    %272 = vector.extract_strided_slice %267 {offsets = [0, 96], sizes = [2, 32], strides = [1, 1]} : vector<2x128xf32> to vector<2x32xf32>
    %273 = arith.mulf %270, %257 : vector<2x32xf32>
    %274 = arith.mulf %269, %271 : vector<2x32xf32>
    %275 = arith.addf %273, %274 : vector<2x32xf32>
    %276 = math.tanh %275 : vector<2x32xf32>
    %277 = arith.mulf %272, %276 : vector<2x32xf32>
    %278 = vector.extract_strided_slice %166 {offsets = [12, 0], sizes = [2, 128], strides = [1, 1]} : vector<16x128xf32> to vector<2x128xf32>
    %cst_57 = arith.constant dense<0.000000e+00> : vector<2x128xf32>
    %279 = tpu.matmul %277, %167, %cst_57 {dimension_numbers = #tpu.dot_dimension_numbers<[1], [0], [0], [1], [0, 0, 1, 1], [], []>} : vector<2x32xf32>, vector<32x128xf32>, vector<2x128xf32> -> vector<2x128xf32>
    %280 = arith.addf %278, %279 : vector<2x128xf32>
    %281 = arith.negf %280 : vector<2x128xf32>
    %282 = math.exp %281 : vector<2x128xf32>
    %cst_58 = arith.constant 1.000000e+00 : f32
    %283 = vector.broadcast %cst_58 : f32 to vector<2x128xf32>
    %284 = arith.addf %283, %282 : vector<2x128xf32>
    %285 = arith.divf %283, %284 : vector<2x128xf32>
    %286 = math.tanh %280 : vector<2x128xf32>
    %287 = vector.extract_strided_slice %285 {offsets = [0, 0], sizes = [2, 32], strides = [1, 1]} : vector<2x128xf32> to vector<2x32xf32>
    %288 = vector.extract_strided_slice %285 {offsets = [0, 32], sizes = [2, 32], strides = [1, 1]} : vector<2x128xf32> to vector<2x32xf32>
    %289 = vector.extract_strided_slice %286 {offsets = [0, 64], sizes = [2, 32], strides = [1, 1]} : vector<2x128xf32> to vector<2x32xf32>
    %290 = vector.extract_strided_slice %285 {offsets = [0, 96], sizes = [2, 32], strides = [1, 1]} : vector<2x128xf32> to vector<2x32xf32>
    %291 = arith.mulf %288, %275 : vector<2x32xf32>
    %292 = arith.mulf %287, %289 : vector<2x32xf32>
    %293 = arith.addf %291, %292 : vector<2x32xf32>
    %294 = math.tanh %293 : vector<2x32xf32>
    %295 = arith.mulf %290, %294 : vector<2x32xf32>
    %296 = vector.extract_strided_slice %166 {offsets = [14, 0], sizes = [2, 128], strides = [1, 1]} : vector<16x128xf32> to vector<2x128xf32>
    %cst_59 = arith.constant dense<0.000000e+00> : vector<2x128xf32>
    %297 = tpu.matmul %295, %167, %cst_59 {dimension_numbers = #tpu.dot_dimension_numbers<[1], [0], [0], [1], [0, 0, 1, 1], [], []>} : vector<2x32xf32>, vector<32x128xf32>, vector<2x128xf32> -> vector<2x128xf32>
    %298 = arith.addf %296, %297 : vector<2x128xf32>
    %299 = arith.negf %298 : vector<2x128xf32>
    %300 = math.exp %299 : vector<2x128xf32>
    %cst_60 = arith.constant 1.000000e+00 : f32
    %301 = vector.broadcast %cst_60 : f32 to vector<2x128xf32>
    %302 = arith.addf %301, %300 : vector<2x128xf32>
    %303 = arith.divf %301, %302 : vector<2x128xf32>
    %304 = math.tanh %298 : vector<2x128xf32>
    %305 = vector.extract_strided_slice %303 {offsets = [0, 0], sizes = [2, 32], strides = [1, 1]} : vector<2x128xf32> to vector<2x32xf32>
    %306 = vector.extract_strided_slice %303 {offsets = [0, 32], sizes = [2, 32], strides = [1, 1]} : vector<2x128xf32> to vector<2x32xf32>
    %307 = vector.extract_strided_slice %304 {offsets = [0, 64], sizes = [2, 32], strides = [1, 1]} : vector<2x128xf32> to vector<2x32xf32>
    %308 = vector.extract_strided_slice %303 {offsets = [0, 96], sizes = [2, 32], strides = [1, 1]} : vector<2x128xf32> to vector<2x32xf32>
    %309 = arith.mulf %306, %293 : vector<2x32xf32>
    %310 = arith.mulf %305, %307 : vector<2x32xf32>
    %311 = arith.addf %309, %310 : vector<2x32xf32>
    %312 = math.tanh %311 : vector<2x32xf32>
    %313 = arith.mulf %308, %312 : vector<2x32xf32>
    %c0_61 = arith.constant 0 : index
    %c0_62 = arith.constant 0 : index
    %314 = vector.load %arg7[%c0_61, %c0_62] : memref<32x1xf32, #tpu.memory_space<vmem>>, vector<32x1xf32>
    %cst_63 = arith.constant dense<0.000000e+00> : vector<2x1xf32>
    %315 = tpu.matmul %313, %314, %cst_63 {dimension_numbers = #tpu.dot_dimension_numbers<[1], [0], [0], [1], [0, 0, 1, 1], [], []>} : vector<2x32xf32>, vector<32x1xf32>, vector<2x1xf32> -> vector<2x1xf32>
    %c0_64 = arith.constant 0 : index
    %c0_65 = arith.constant 0 : index
    %316 = vector.load %arg8[%c0_64, %c0_65] : memref<1x1xf32, #tpu.memory_space<vmem>>, vector<1x1xf32>
    %317 = vector.broadcast %316 : vector<1x1xf32> to vector<2x1xf32>
    %318 = arith.addf %315, %317 : vector<2x1xf32>
    %c0_66 = arith.constant 0 : index
    %c0_67 = arith.constant 0 : index
    %319 = vector.load %arg9[%c0_66, %c0_67] : memref<2x1xf32, #tpu.memory_space<vmem>>, vector<2x1xf32>
    tpu.vector_store %arg9[%c0_66, %c0_67], %318 {strides = array<i32>} : memref<2x1xf32, #tpu.memory_space<vmem>>, vector<2x1xf32>,
    return
  }
}

</mosaic_0001>

<llo_original>
// kernel: health_forward.1
$region0: #{health_forward.1}
  #allocation0 [shape = 'u32[]', space=smem, size = 0x4, offset = 0x4, fixed_abs, tag = 'smem constant byte address 0x4 - core index']
  #allocation1 [shape = 'u32[144,128]{1,0:T(1,128)}', space=vmem, size = 0x12000, scoped, tag = 'internal scratch']
  #allocation2 [shape = 'f32[16,32]{1,0:T(8,128)}', space=vmem, size = 0x2000, scoped, tag = 'scratch operand']
  #allocation3 [shape = 'f32[1,1]{1,0:T(1,128)S(1)}', space=vmem, size = 0x200, scoped, tag = 'scoped memory for health_forward.1']
  %s0 = inlined_call_operand.vmem [shape: f32[16,4], index: 0, kind: input, shape index: {}]
  %s1 = inlined_call_operand.vmem [shape: f32[4,128], index: 1, kind: input, shape index: {}]
  %s2 = inlined_call_operand.vmem [shape: f32[32,128], index: 2, kind: input, shape index: {}]
  %s3 = inlined_call_operand.vmem [shape: f32[1,128], index: 3, kind: input, shape index: {}]
  %s4 = inlined_call_operand.vmem [shape: f32[32,128], index: 4, kind: input, shape index: {}]
  %s5 = inlined_call_operand.hbm [shape: f32[32,128], index: 5, kind: input, shape index: {}]
  %s6 = inlined_call_operand.vmem [shape: f32[1,128], index: 6, kind: input, shape index: {}]
  %s7 = inlined_call_operand.vmem [shape: f32[32,1], index: 7, kind: input, shape index: {}]
  %s8 = inlined_call_operand.<no memory space> [shape: f32[1,1], index: 8, kind: input, shape index: {}]
  %s9 = inlined_call_operand.vmem [shape: f32[2,1], index: 9, kind: output, shape index: {}]
  %s10 = sld [smem:[#allocation0]]
  $region50: #{health_forward.1} parent=0
    _
  %s12 = ssub.s32 1, %s10
  %s13 = scalar_select 0, %s12, %s10
  %v14 = vstv %s8
  %15 = vst [vmem:[#allocation3] sm:$0x1] %v14
  $region1: #{health_forward.1} parent=0
    #allocation4 [shape = 'u8[16384]{0}', space=vmem, size = 0x4000, scoped, tag = 'input window, operand 5, single buffered']
    #allocation5 [shape = 's32[1]{0}', space=sflag, size = 0x4, scoped, tag = 'scoped memory for health_forward.1']
    %16 = vsyncpa [#allocation5], 0
    // Predicated region
    $region2: #{health_forward.1} parent=1 // pred_check
      _
    $region3: #{health_forward.1} parent=1 // pred_check_branch
      %18 = sbr.rel (0) target = $region5
    $region4: #{health_forward.1} parent=1 // pred_region
      _
    $region5: #{health_forward.1} parent=1 // pred_fallthru
      _
    // Predicated region
    $region6: #{health_forward.1} parent=1 // pred_check
      _
    $region7: #{health_forward.1} parent=1 // pred_check_branch
      %20 = sbr.rel (0) target = $region9
    $region8: #{health_forward.1} parent=1 // pred_region
      _
    $region9: #{health_forward.1} parent=1 // pred_fallthru
      _
    // Predicated region
    $region10: #{health_forward.1} parent=1 // pred_check
      _
    $region11: #{health_forward.1} parent=1 // pred_check_branch
      %22 = sbr.rel (0) target = $region13
    $region12: #{health_forward.1} parent=1 // pred_region
      _
    $region13: #{health_forward.1} parent=1 // pred_fallthru
      _
    // Predicated region
    $region14: #{health_forward.1} parent=1 // pred_check
      _
    $region15: #{health_forward.1} parent=1 // pred_check_branch
      %24 = sbr.rel (0) target = $region17
    $region16: #{health_forward.1} parent=1 // pred_region
      _
    $region17: #{health_forward.1} parent=1 // pred_fallthru
      _
    // Predicated region
    $region18: #{health_forward.1} parent=1 // pred_check
      _
    $region19: #{health_forward.1} parent=1 // pred_check_branch
      %26 = sbr.rel (0) target = $region21
    $region20: #{health_forward.1} parent=1 // pred_region
      _
    $region21: #{health_forward.1} parent=1 // pred_fallthru
      _
    // Predicated region
    $region22: #{health_forward.1} parent=1 // pred_check
      _
    $region23: #{health_forward.1} parent=1 // pred_check_branch
      %28 = sbr.rel (0) target = $region25
    $region24: #{health_forward.1} parent=1 // pred_region
      %s30 = ssub.s32 512, 512
      %31 = vsyncadd [#allocation5], %s30
      %s32 = sshll.u32 [#allocation4], 4
      %s33 = int_to_ptr.vmem [resolvable:$true] %s32
      %38 = dma.hbm_to_vmem [thread:$0]  %s5, 512, %s33, [#allocation5], 128, 128, 8
    $region25: #{health_forward.1} parent=1 // pred_fallthru
      _
    // Predicated region
    $region26: #{health_forward.1} parent=1 // pred_check
      _
    $region27: #{health_forward.1} parent=1 // pred_check_branch
      %40 = sbr.rel (0) target = $region29
    $region28: #{health_forward.1} parent=1 // pred_region
      _
    $region29: #{health_forward.1} parent=1 // pred_fallthru
      _
    // Predicated region
    $region30: #{health_forward.1} parent=1 // pred_check
      _
    $region31: #{health_forward.1} parent=1 // pred_check_branch
      %42 = sbr.rel (0) target = $region33
    $region32: #{health_forward.1} parent=1 // pred_region
      _
    $region33: #{health_forward.1} parent=1 // pred_fallthru
      _
    // Predicated region
    $region34: #{health_forward.1} parent=1 // pred_check
      _
    $region35: #{health_forward.1} parent=1 // pred_check_branch
      %44 = sbr.rel (0) target = $region37
    $region36: #{health_forward.1} parent=1 // pred_region
      _
    $region37: #{health_forward.1} parent=1 // pred_fallthru
      _
    // Predicated region
    $region38: #{health_forward.1} parent=1 // pred_check
      _
    $region39: #{health_forward.1} parent=1 // pred_check_branch
      %46 = sbr.rel (0) target = $region41
    $region40: #{health_forward.1} parent=1 // pred_region
      %47 = dma.done [#allocation5], 512
    $region41: #{health_forward.1} parent=1 // pred_fallthru
      _
    %v48 = vld [vmem:[%s0] sm:$0xff]
    %v49 = vld [vmem:[%s0 + $0x8] sm:$0xff]
    %v50 = vld [vmem:[%s1] sm:$0xf]
    %v51 = vld [vmem:[%s3] sm:$0x1]
    %v53 = vlaneseq
    %v54 = vshrl.u32 %v53, 7
    %v55 = vsub.s32 0, %v54
    %v56 = vrot.slane %v51, %v55
    %vm58 = vcmask 31744
    %v60 = vsel %vm58, %v48, 0
    %v63 = vsel %vm58, %v49, 0
    %vm65 = vcmask 1043456
    %v67 = vsel %vm65, %v50, 0
    %69 = vmatprep.subr.mxu0 0.0
    %70 = vmatpush1.msra.mxu0 %v67
    %71 = vmatprep.subr.mxu0 0.0
    %72 = vmatpush1.msra.mxu0 0.0
    %73 = vmatprep.subr.mxu0 0.0
    %74 = vmatpush1.msra.mxu0 0.0
    %75 = vmatprep.subr.mxu0 0.0
    %76 = vmatpush1.msra.mxu0 0.0
    %77 = vmatprep.subr.mxu0 0.0
    %78 = vmatpush1.msra.mxu0 0.0
    %79 = vmatprep.subr.mxu0 0.0
    %80 = vmatpush1.msra.mxu0 0.0
    %81 = vmatprep.subr.mxu0 0.0
    %82 = vmatpush1.msra.mxu0 0.0
    %83 = vmatprep.subr.mxu0 0.0
    %84 = vmatpush1.msra.mxu0 0.0
    %85 = vmatprep.subr.mxu0 0.0
    %86 = vmatpush1.msra.mxu0 0.0
    %87 = vmatprep.subr.mxu0 0.0
    %88 = vmatpush1.msra.mxu0 0.0
    %89 = vmatprep.subr.mxu0 0.0
    %90 = vmatpush1.msra.mxu0 0.0
    %91 = vmatprep.subr.mxu0 0.0
    %92 = vmatpush1.msra.mxu0 0.0
    %93 = vmatprep.subr.mxu0 0.0
    %94 = vmatpush1.msra.mxu0 0.0
    %95 = vmatprep.subr.mxu0 0.0
    %96 = vmatpush1.msra.mxu0 0.0
    %97 = vmatprep.subr.mxu0 0.0
    %98 = vmatpush1.msra.mxu0 0.0
    %99 = vmatprep.subr.mxu0 0.0
    %100 = vmatpush1.msra.mxu0 0.0
    %101 = vmatprep.subr.mxu0 0.0
    %102 = vmatpush1.msra.mxu0 0.0
    %103 = vmatprep.subr.mxu0 0.0
    %104 = vmatpush1.msra.mxu0 0.0
    %105 = vmatprep.subr.mxu0 0.0
    %106 = vmatpush1.msra.mxu0 0.0
    %107 = vmatprep.subr.mxu0 0.0
    %108 = vmatpush1.msra.mxu0 0.0
    %109 = vmatprep.subr.mxu0 0.0
    %110 = vmatpush1.msra.mxu0 0.0
    %111 = vmatprep.subr.mxu0 0.0
    %112 = vmatpush1.msra.mxu0 0.0
    %113 = vmatprep.subr.mxu0 0.0
    %114 = vmatpush1.msra.mxu0 0.0
    %115 = vmatprep.subr.mxu0 0.0
    %116 = vmatpush1.msra.mxu0 0.0
    %117 = vmatprep.subr.mxu0 0.0
    %118 = vmatpush1.msra.mxu0 0.0
    %119 = vmatprep.subr.mxu0 0.0
    %120 = vmatpush1.msra.mxu0 0.0
    %121 = vmatprep.subr.mxu0 0.0
    %122 = vmatpush1.msra.mxu0 0.0
    %123 = vmatprep.subr.mxu0 0.0
    %124 = vmatpush1.msra.mxu0 0.0
    %125 = vmatprep.subr.mxu0 0.0
    %126 = vmatpush1.msra.mxu0 0.0
    %127 = vmatprep.subr.mxu0 0.0
    %128 = vmatpush1.msra.mxu0 0.0
    %129 = vmatprep.subr.mxu0 0.0
    %130 = vmatpush1.msra.mxu0 0.0
    %131 = vmatprep.subr.mxu0 0.0
    %132 = vmatpush1.msra.mxu0 0.0
    %133 = vmatprep.mubr.f32.mxu0 0.0
    %134 = vmatmul.mubr.f32.gmra.mrb[0].mxu0 %v60
    %v135 = vpop.f32.mrb[0].mxu0
    %v136 = vadd.f32 %v56, %v135
    %v137 = vpop.f32.mrb[0].mxu0
    %138 = vmatprep.mubr.f32.mxu0 0.0
    %139 = vmatmul.mubr.f32.gmra.mrb[0].mxu0 %v63
    %v140 = vpop.f32.mrb[0].mxu0
    %v141 = vadd.f32 %v56, %v140
    %v142 = vpop.f32.mrb[0].mxu0
    %143 = vdwg.mxu0
    %v144 = vld [vmem:[%s2] sm:$0xff]
    %v145 = vld [vmem:[%s2 + $0x8] sm:$0xff]
    %v146 = vld [vmem:[%s2 + $0x10] sm:$0xff]
    %v147 = vld [vmem:[%s2 + $0x18] sm:$0xff]
    %vm148 = vcmask 261120
    %v150 = vsel %vm148, 0.0, 0
    %152 = vmatprep.subr.mxu0 0.0
    %153 = vmatpush1.msra.mxu0 %v144
    %154 = vmatprep.subr.mxu0 0.0
    %155 = vmatpush1.msra.mxu0 %v145
    %156 = vmatprep.subr.mxu0 0.0
    %157 = vmatpush1.msra.mxu0 %v146
    %158 = vmatprep.subr.mxu0 0.0
    %159 = vmatpush1.msra.mxu0 %v147
    %160 = vmatprep.subr.mxu0 0.0
    %161 = vmatpush1.msra.mxu0 0.0
    %162 = vmatprep.subr.mxu0 0.0
    %163 = vmatpush1.msra.mxu0 0.0
    %164 = vmatprep.subr.mxu0 0.0
    %165 = vmatpush1.msra.mxu0 0.0
    %166 = vmatprep.subr.mxu0 0.0
    %167 = vmatpush1.msra.mxu0 0.0
    %168 = vmatprep.subr.mxu0 0.0
    %169 = vmatpush1.msra.mxu0 0.0
    %170 = vmatprep.subr.mxu0 0.0
    %171 = vmatpush1.msra.mxu0 0.0
    %172 = vmatprep.subr.mxu0 0.0
    %173 = vmatpush1.msra.mxu0 0.0
    %174 = vmatprep.subr.mxu0 0.0
    %175 = vmatpush1.msra.mxu0 0.0
    %176 = vmatprep.subr.mxu0 0.0
    %177 = vmatpush1.msra.mxu0 0.0
    %178 = vmatprep.subr.mxu0 0.0
    %179 = vmatpush1.msra.mxu0 0.0
    %180 = vmatprep.subr.mxu0 0.0
    %181 = vmatpush1.msra.mxu0 0.0
    %182 = vmatprep.subr.mxu0 0.0
    %183 = vmatpush1.msra.mxu0 0.0
    %184 = vmatprep.subr.mxu0 0.0
    %185 = vmatpush1.msra.mxu0 0.0
    %186 = vmatprep.subr.mxu0 0.0
    %187 = vmatpush1.msra.mxu0 0.0
    %188 = vmatprep.subr.mxu0 0.0
    %189 = vmatpush1.msra.mxu0 0.0
    %190 = vmatprep.subr.mxu0 0.0
    %191 = vmatpush1.msra.mxu0 0.0
    %192 = vmatprep.subr.mxu0 0.0
    %193 = vmatpush1.msra.mxu0 0.0
    %194 = vmatprep.subr.mxu0 0.0
    %195 = vmatpush1.msra.mxu0 0.0
    %196 = vmatprep.subr.mxu0 0.0
    %197 = vmatpush1.msra.mxu0 0.0
    %198 = vmatprep.subr.mxu0 0.0
    %199 = vmatpush1.msra.mxu0 0.0
    %200 = vmatprep.subr.mxu0 0.0
    %201 = vmatpush1.msra.mxu0 0.0
    %202 = vmatprep.subr.mxu0 0.0
    %203 = vmatpush1.msra.mxu0 0.0
    %204 = vmatprep.subr.mxu0 0.0
    %205 = vmatpush1.msra.mxu0 0.0
    %206 = vmatprep.subr.mxu0 0.0
    %207 = vmatpush1.msra.mxu0 0.0
    %208 = vmatprep.subr.mxu0 0.0
    %209 = vmatpush1.msra.mxu0 0.0
    %210 = vmatprep.subr.mxu0 0.0
    %211 = vmatpush1.msra.mxu0 0.0
    %212 = vmatprep.subr.mxu0 0.0
    %213 = vmatpush1.msra.mxu0 0.0
    %214 = vmatprep.subr.mxu0 0.0
    %215 = vmatpush1.msra.mxu0 0.0
    %216 = vmatprep.mubr.f32.mxu0 0.0
    %217 = vmatmul.mubr.f32.gmra.mrb[0].mxu0 %v150
    %v218 = vpop.f32.mrb[0].mxu0
    %v219 = vadd.f32 0.0, %v218
    %v220 = vpop.f32.mrb[0].mxu0
    %221 = vdwg.mxu0
    %v222 = vadd.f32 %v136, %v219
    %v223 = vxor.u32 %v222, 2147483648
    %v224 = vmul.f32 %v223, 1.442695
    %v225 = vpow.pop %v224
    %v226 = vadd.f32 %v225, 1.0
    %v227 = vrcp.pop %v226
    %v228 = vmul.f32 1.0, %v227
    %v229 = vtanh.pop %v222
    %v230 = vmul.f32 %v228, 0.0
    %232 = vrot.lane.b32.xlu0 %v229, 64
    %v233 = vpop.permute.xlu0 %232
    %v235 = vmul.f32 %v228, %v233
    %237 = vrot.lane.b32.xlu0 %v235, 32
    %v238 = vpop.permute.xlu0 %237
    %v240 = vadd.f32 %v230, %v238
    %v241 = vtanh.pop %v240
    %243 = vrot.lane.b32.xlu0 %v241, 64
    %v244 = vpop.permute.xlu0 %243
    %v246 = vmul.f32 %v228, %v244
    %248 = vrot.lane.b32.xlu0 %v246, 32
    %v249 = vpop.permute.xlu0 %248
    %vm251 = vcmask 254976
    %252 = vst.msk [vmem:[#allocation2] sm:$0x3] %vm251, %v249
    %v253 = vsel %vm148, %v249, 0
    %255 = vmatprep.subr.mxu0 0.0
    %256 = vmatpush1.msra.mxu0 %v144
    %257 = vmatprep.subr.mxu0 0.0
    %258 = vmatpush1.msra.mxu0 %v145
    %259 = vmatprep.subr.mxu0 0.0
    %260 = vmatpush1.msra.mxu0 %v146
    %261 = vmatprep.subr.mxu0 0.0
    %262 = vmatpush1.msra.mxu0 %v147
    %263 = vmatprep.subr.mxu0 0.0
    %264 = vmatpush1.msra.mxu0 0.0
    %265 = vmatprep.subr.mxu0 0.0
    %266 = vmatpush1.msra.mxu0 0.0
    %267 = vmatprep.subr.mxu0 0.0
    %268 = vmatpush1.msra.mxu0 0.0
    %269 = vmatprep.subr.mxu0 0.0
    %270 = vmatpush1.msra.mxu0 0.0
    %271 = vmatprep.subr.mxu0 0.0
    %272 = vmatpush1.msra.mxu0 0.0
    %273 = vmatprep.subr.mxu0 0.0
    %274 = vmatpush1.msra.mxu0 0.0
    %275 = vmatprep.subr.mxu0 0.0
    %276 = vmatpush1.msra.mxu0 0.0
    %277 = vmatprep.subr.mxu0 0.0
    %278 = vmatpush1.msra.mxu0 0.0
    %279 = vmatprep.subr.mxu0 0.0
    %280 = vmatpush1.msra.mxu0 0.0
    %281 = vmatprep.subr.mxu0 0.0
    %282 = vmatpush1.msra.mxu0 0.0
    %283 = vmatprep.subr.mxu0 0.0
    %284 = vmatpush1.msra.mxu0 0.0
    %285 = vmatprep.subr.mxu0 0.0
    %286 = vmatpush1.msra.mxu0 0.0
    %287 = vmatprep.subr.mxu0 0.0
    %288 = vmatpush1.msra.mxu0 0.0
    %289 = vmatprep.subr.mxu0 0.0
    %290 = vmatpush1.msra.mxu0 0.0
    %291 = vmatprep.subr.mxu0 0.0
    %292 = vmatpush1.msra.mxu0 0.0
    %293 = vmatprep.subr.mxu0 0.0
    %294 = vmatpush1.msra.mxu0 0.0
    %295 = vmatprep.subr.mxu0 0.0
    %296 = vmatpush1.msra.mxu0 0.0
    %297 = vmatprep.subr.mxu0 0.0
    %298 = vmatpush1.msra.mxu0 0.0
    %299 = vmatprep.subr.mxu0 0.0
    %300 = vmatpush1.msra.mxu0 0.0
    %301 = vmatprep.subr.mxu0 0.0
    %302 = vmatpush1.msra.mxu0 0.0
    %303 = vmatprep.subr.mxu0 0.0
    %304 = vmatpush1.msra.mxu0 0.0
    %305 = vmatprep.subr.mxu0 0.0
    %306 = vmatpush1.msra.mxu0 0.0
    %307 = vmatprep.subr.mxu0 0.0
    %308 = vmatpush1.msra.mxu0 0.0
    %309 = vmatprep.subr.mxu0 0.0
    %310 = vmatpush1.msra.mxu0 0.0
    %311 = vmatprep.subr.mxu0 0.0
    %312 = vmatpush1.msra.mxu0 0.0
    %313 = vmatprep.subr.mxu0 0.0
    %314 = vmatpush1.msra.mxu0 0.0
    %315 = vmatprep.subr.mxu0 0.0
    %316 = vmatpush1.msra.mxu0 0.0
    %317 = vmatprep.subr.mxu0 0.0
    %318 = vmatpush1.msra.mxu0 0.0
    %319 = vmatprep.mubr.f32.mxu0 0.0
    %320 = vmatmul.mubr.f32.gmra.mrb[0].mxu0 %v253
    %v321 = vpop.f32.mrb[0].mxu0
    %v322 = vadd.f32 0.0, %v321
    %v323 = vpop.f32.mrb[0].mxu0
    %324 = vdwg.mxu0
    %v326 = vrot.slane %v322, 6
    %v328 = vadd.f32 %v136, %v326
    %v329 = vxor.u32 %v328, 2147483648
    %v330 = vmul.f32 %v329, 1.442695
    %v331 = vpow.pop %v330
    %v332 = vadd.f32 %v331, 1.0
    %v333 = vrcp.pop %v332
    %v334 = vmul.f32 1.0, %v333
    %v335 = vtanh.pop %v328
    %v337 = vrot.slane %v240, 6
    %v339 = vmul.f32 %v334, %v337
    %341 = vrot.lane.b32.xlu0 %v335, 64
    %v342 = vpop.permute.xlu0 %341
    %v344 = vmul.f32 %v334, %v342
    %346 = vrot.lane.b32.xlu0 %v344, 32
    %v347 = vpop.permute.xlu0 %346
    %v349 = vadd.f32 %v339, %v347
    %v350 = vtanh.pop %v349
    %352 = vrot.lane.b32.xlu0 %v350, 64
    %v353 = vpop.permute.xlu0 %352
    %v355 = vmul.f32 %v334, %v353
    %357 = vrot.lane.b32.xlu0 %v355, 32
    %v358 = vpop.permute.xlu0 %357
    %vm360 = vcmask 257026
    %361 = vst.msk [vmem:[#allocation2] sm:$0xc] %vm360, %v358
    %v362 = vrot.slane %v355, 2
    %363 = vrot.lane.b32.xlu0 %v362, 32
    %v364 = vpop.permute.xlu0 %363
    %v365 = vsel %vm148, %v364, 0
    %367 = vmatprep.subr.mxu0 0.0
    %368 = vmatpush1.msra.mxu0 %v144
    %369 = vmatprep.subr.mxu0 0.0
    %370 = vmatpush1.msra.mxu0 %v145
    %371 = vmatprep.subr.mxu0 0.0
    %372 = vmatpush1.msra.mxu0 %v146
    %373 = vmatprep.subr.mxu0 0.0
    %374 = vmatpush1.msra.mxu0 %v147
    %375 = vmatprep.subr.mxu0 0.0
    %376 = vmatpush1.msra.mxu0 0.0
    %377 = vmatprep.subr.mxu0 0.0
    %378 = vmatpush1.msra.mxu0 0.0
    %379 = vmatprep.subr.mxu0 0.0
    %380 = vmatpush1.msra.mxu0 0.0
    %381 = vmatprep.subr.mxu0 0.0
    %382 = vmatpush1.msra.mxu0 0.0
    %383 = vmatprep.subr.mxu0 0.0
    %384 = vmatpush1.msra.mxu0 0.0
    %385 = vmatprep.subr.mxu0 0.0
    %386 = vmatpush1.msra.mxu0 0.0
    %387 = vmatprep.subr.mxu0 0.0
    %388 = vmatpush1.msra.mxu0 0.0
    %389 = vmatprep.subr.mxu0 0.0
    %390 = vmatpush1.msra.mxu0 0.0
    %391 = vmatprep.subr.mxu0 0.0
    %392 = vmatpush1.msra.mxu0 0.0
    %393 = vmatprep.subr.mxu0 0.0
    %394 = vmatpush1.msra.mxu0 0.0
    %395 = vmatprep.subr.mxu0 0.0
    %396 = vmatpush1.msra.mxu0 0.0
    %397 = vmatprep.subr.mxu0 0.0
    %398 = vmatpush1.msra.mxu0 0.0
    %399 = vmatprep.subr.mxu0 0.0
    %400 = vmatpush1.msra.mxu0 0.0
    %401 = vmatprep.subr.mxu0 0.0
    %402 = vmatpush1.msra.mxu0 0.0
    %403 = vmatprep.subr.mxu0 0.0
    %404 = vmatpush1.msra.mxu0 0.0
    %405 = vmatprep.subr.mxu0 0.0
    %406 = vmatpush1.msra.mxu0 0.0
    %407 = vmatprep.subr.mxu0 0.0
    %408 = vmatpush1.msra.mxu0 0.0
    %409 = vmatprep.subr.mxu0 0.0
    %410 = vmatpush1.msra.mxu0 0.0
    %411 = vmatprep.subr.mxu0 0.0
    %412 = vmatpush1.msra.mxu0 0.0
    %413 = vmatprep.subr.mxu0 0.0
    %414 = vmatpush1.msra.mxu0 0.0
    %415 = vmatprep.subr.mxu0 0.0
    %416 = vmatpush1.msra.mxu0 0.0
    %417 = vmatprep.subr.mxu0 0.0
    %418 = vmatpush1.msra.mxu0 0.0
    %419 = vmatprep.subr.mxu0 0.0
    %420 = vmatpush1.msra.mxu0 0.0
    %421 = vmatprep.subr.mxu0 0.0
    %422 = vmatpush1.msra.mxu0 0.0
    %423 = vmatprep.subr.mxu0 0.0
    %424 = vmatpush1.msra.mxu0 0.0
    %425 = vmatprep.subr.mxu0 0.0
    %426 = vmatpush1.msra.mxu0 0.0
    %427 = vmatprep.subr.mxu0 0.0
    %428 = vmatpush1.msra.mxu0 0.0
    %429 = vmatprep.subr.mxu0 0.0
    %430 = vmatpush1.msra.mxu0 0.0
    %431 = vmatprep.mubr.f32.mxu0 0.0
    %432 = vmatmul.mubr.f32.gmra.mrb[0].mxu0 %v365
    %v433 = vpop.f32.mrb[0].mxu0
    %v434 = vadd.f32 0.0, %v433
    %v435 = vpop.f32.mrb[0].mxu0
    %436 = vdwg.mxu0
    %v438 = vrot.slane %v434, 4
    %v440 = vadd.f32 %v136, %v438
    %v441 = vxor.u32 %v440, 2147483648
    %v442 = vmul.f32 %v441, 1.442695
    %v443 = vpow.pop %v442
    %v444 = vadd.f32 %v443, 1.0
    %v445 = vrcp.pop %v444
    %v446 = vmul.f32 1.0, %v445
    %v447 = vtanh.pop %v440
    %v449 = vrot.slane %v349, 6
    %v451 = vmul.f32 %v446, %v449
    %453 = vrot.lane.b32.xlu0 %v447, 64
    %v454 = vpop.permute.xlu0 %453
    %v456 = vmul.f32 %v446, %v454
    %458 = vrot.lane.b32.xlu0 %v456, 32
    %v459 = vpop.permute.xlu0 %458
    %v461 = vadd.f32 %v451, %v459
    %v462 = vtanh.pop %v461
    %464 = vrot.lane.b32.xlu0 %v462, 64
    %v465 = vpop.permute.xlu0 %464
    %v467 = vmul.f32 %v446, %v465
    %469 = vrot.lane.b32.xlu0 %v467, 32
    %v470 = vpop.permute.xlu0 %469
    %vm472 = vcmask 259076
    %473 = vst.msk [vmem:[#allocation2] sm:$0x30] %vm472, %v470
    %v474 = vrot.slane %v467, 4
    %475 = vrot.lane.b32.xlu0 %v474, 32
    %v476 = vpop.permute.xlu0 %475
    %v477 = vsel %vm148, %v476, 0
    %479 = vmatprep.subr.mxu0 0.0
    %480 = vmatpush1.msra.mxu0 %v144
    %481 = vmatprep.subr.mxu0 0.0
    %482 = vmatpush1.msra.mxu0 %v145
    %483 = vmatprep.subr.mxu0 0.0
    %484 = vmatpush1.msra.mxu0 %v146
    %485 = vmatprep.subr.mxu0 0.0
    %486 = vmatpush1.msra.mxu0 %v147
    %487 = vmatprep.subr.mxu0 0.0
    %488 = vmatpush1.msra.mxu0 0.0
    %489 = vmatprep.subr.mxu0 0.0
    %490 = vmatpush1.msra.mxu0 0.0
    %491 = vmatprep.subr.mxu0 0.0
    %492 = vmatpush1.msra.mxu0 0.0
    %493 = vmatprep.subr.mxu0 0.0
    %494 = vmatpush1.msra.mxu0 0.0
    %495 = vmatprep.subr.mxu0 0.0
    %496 = vmatpush1.msra.mxu0 0.0
    %497 = vmatprep.subr.mxu0 0.0
    %498 = vmatpush1.msra.mxu0 0.0
    %499 = vmatprep.subr.mxu0 0.0
    %500 = vmatpush1.msra.mxu0 0.0
    %501 = vmatprep.subr.mxu0 0.0
    %502 = vmatpush1.msra.mxu0 0.0
    %503 = vmatprep.subr.mxu0 0.0
    %504 = vmatpush1.msra.mxu0 0.0
    %505 = vmatprep.subr.mxu0 0.0
    %506 = vmatpush1.msra.mxu0 0.0
    %507 = vmatprep.subr.mxu0 0.0
    %508 = vmatpush1.msra.mxu0 0.0
    %509 = vmatprep.subr.mxu0 0.0
    %510 = vmatpush1.msra.mxu0 0.0
    %511 = vmatprep.subr.mxu0 0.0
    %512 = vmatpush1.msra.mxu0 0.0
    %513 = vmatprep.subr.mxu0 0.0
    %514 = vmatpush1.msra.mxu0 0.0
    %515 = vmatprep.subr.mxu0 0.0
    %516 = vmatpush1.msra.mxu0 0.0
    %517 = vmatprep.subr.mxu0 0.0
    %518 = vmatpush1.msra.mxu0 0.0
    %519 = vmatprep.subr.mxu0 0.0
    %520 = vmatpush1.msra.mxu0 0.0
    %521 = vmatprep.subr.mxu0 0.0
    %522 = vmatpush1.msra.mxu0 0.0
    %523 = vmatprep.subr.mxu0 0.0
    %524 = vmatpush1.msra.mxu0 0.0
    %525 = vmatprep.subr.mxu0 0.0
    %526 = vmatpush1.msra.mxu0 0.0
    %527 = vmatprep.subr.mxu0 0.0
    %528 = vmatpush1.msra.mxu0 0.0
    %529 = vmatprep.subr.mxu0 0.0
    %530 = vmatpush1.msra.mxu0 0.0
    %531 = vmatprep.subr.mxu0 0.0
    %532 = vmatpush1.msra.mxu0 0.0
    %533 = vmatprep.subr.mxu0 0.0
    %534 = vmatpush1.msra.mxu0 0.0
    %535 = vmatprep.subr.mxu0 0.0
    %536 = vmatpush1.msra.mxu0 0.0
    %537 = vmatprep.subr.mxu0 0.0
    %538 = vmatpush1.msra.mxu0 0.0
    %539 = vmatprep.subr.mxu0 0.0
    %540 = vmatpush1.msra.mxu0 0.0
    %541 = vmatprep.subr.mxu0 0.0
    %542 = vmatpush1.msra.mxu0 0.0
    %543 = vmatprep.mubr.f32.mxu0 0.0
    %544 = vmatmul.mubr.f32.gmra.mrb[0].mxu0 %v477
    %v545 = vpop.f32.mrb[0].mxu0
    %v546 = vadd.f32 0.0, %v545
    %v547 = vpop.f32.mrb[0].mxu0
    %548 = vdwg.mxu0
    %v550 = vrot.slane %v546, 2
    %v552 = vadd.f32 %v136, %v550
    %v553 = vxor.u32 %v552, 2147483648
    %v554 = vmul.f32 %v553, 1.442695
    %v555 = vpow.pop %v554
    %v556 = vadd.f32 %v555, 1.0
    %v557 = vrcp.pop %v556
    %v558 = vmul.f32 1.0, %v557
    %v559 = vtanh.pop %v552
    %v561 = vrot.slane %v461, 6
    %v563 = vmul.f32 %v558, %v561
    %565 = vrot.lane.b32.xlu0 %v559, 64
    %v566 = vpop.permute.xlu0 %565
    %v568 = vmul.f32 %v558, %v566
    %570 = vrot.lane.b32.xlu0 %v568, 32
    %v571 = vpop.permute.xlu0 %570
    %v573 = vadd.f32 %v563, %v571
    %v574 = vtanh.pop %v573
    %576 = vrot.lane.b32.xlu0 %v574, 64
    %v577 = vpop.permute.xlu0 %576
    %v579 = vmul.f32 %v558, %v577
    %581 = vrot.lane.b32.xlu0 %v579, 32
    %v582 = vpop.permute.xlu0 %581
    %vm584 = vcmask 261126
    %585 = vst.msk [vmem:[#allocation2] sm:$0xc0] %vm584, %v582
    %v586 = vrot.slane %v579, 6
    %587 = vrot.lane.b32.xlu0 %v586, 32
    %v588 = vpop.permute.xlu0 %587
    %v589 = vsel %vm148, %v588, 0
    %591 = vmatprep.subr.mxu0 0.0
    %592 = vmatpush1.msra.mxu0 %v144
    %593 = vmatprep.subr.mxu0 0.0
    %594 = vmatpush1.msra.mxu0 %v145
    %595 = vmatprep.subr.mxu0 0.0
    %596 = vmatpush1.msra.mxu0 %v146
    %597 = vmatprep.subr.mxu0 0.0
    %598 = vmatpush1.msra.mxu0 %v147
    %599 = vmatprep.subr.mxu0 0.0
    %600 = vmatpush1.msra.mxu0 0.0
    %601 = vmatprep.subr.mxu0 0.0
    %602 = vmatpush1.msra.mxu0 0.0
    %603 = vmatprep.subr.mxu0 0.0
    %604 = vmatpush1.msra.mxu0 0.0
    %605 = vmatprep.subr.mxu0 0.0
    %606 = vmatpush1.msra.mxu0 0.0
    %607 = vmatprep.subr.mxu0 0.0
    %608 = vmatpush1.msra.mxu0 0.0
    %609 = vmatprep.subr.mxu0 0.0
    %610 = vmatpush1.msra.mxu0 0.0
    %611 = vmatprep.subr.mxu0 0.0
    %612 = vmatpush1.msra.mxu0 0.0
    %613 = vmatprep.subr.mxu0 0.0
    %614 = vmatpush1.msra.mxu0 0.0
    %615 = vmatprep.subr.mxu0 0.0
    %616 = vmatpush1.msra.mxu0 0.0
    %617 = vmatprep.subr.mxu0 0.0
    %618 = vmatpush1.msra.mxu0 0.0
    %619 = vmatprep.subr.mxu0 0.0
    %620 = vmatpush1.msra.mxu0 0.0
    %621 = vmatprep.subr.mxu0 0.0
    %622 = vmatpush1.msra.mxu0 0.0
    %623 = vmatprep.subr.mxu0 0.0
    %624 = vmatpush1.msra.mxu0 0.0
    %625 = vmatprep.subr.mxu0 0.0
    %626 = vmatpush1.msra.mxu0 0.0
    %627 = vmatprep.subr.mxu0 0.0
    %628 = vmatpush1.msra.mxu0 0.0
    %629 = vmatprep.subr.mxu0 0.0
    %630 = vmatpush1.msra.mxu0 0.0
    %631 = vmatprep.subr.mxu0 0.0
    %632 = vmatpush1.msra.mxu0 0.0
    %633 = vmatprep.subr.mxu0 0.0
    %634 = vmatpush1.msra.mxu0 0.0
    %635 = vmatprep.subr.mxu0 0.0
    %636 = vmatpush1.msra.mxu0 0.0
    %637 = vmatprep.subr.mxu0 0.0
    %638 = vmatpush1.msra.mxu0 0.0
    %639 = vmatprep.subr.mxu0 0.0
    %640 = vmatpush1.msra.mxu0 0.0
    %641 = vmatprep.subr.mxu0 0.0
    %642 = vmatpush1.msra.mxu0 0.0
    %643 = vmatprep.subr.mxu0 0.0
    %644 = vmatpush1.msra.mxu0 0.0
    %645 = vmatprep.subr.mxu0 0.0
    %646 = vmatpush1.msra.mxu0 0.0
    %647 = vmatprep.subr.mxu0 0.0
    %648 = vmatpush1.msra.mxu0 0.0
    %649 = vmatprep.subr.mxu0 0.0
    %650 = vmatpush1.msra.mxu0 0.0
    %651 = vmatprep.subr.mxu0 0.0
    %652 = vmatpush1.msra.mxu0 0.0
    %653 = vmatprep.subr.mxu0 0.0
    %654 = vmatpush1.msra.mxu0 0.0
    %655 = vmatprep.mubr.f32.mxu0 0.0
    %656 = vmatmul.mubr.f32.gmra.mrb[0].mxu0 %v589
    %v657 = vpop.f32.mrb[0].mxu0
    %v658 = vadd.f32 0.0, %v657
    %v659 = vpop.f32.mrb[0].mxu0
    %660 = vdwg.mxu0
    %v661 = vadd.f32 %v141, %v658
    %v662 = vxor.u32 %v661, 2147483648
    %v663 = vmul.f32 %v662, 1.442695
    %v664 = vpow.pop %v663
    %v665 = vadd.f32 %v664, 1.0
    %v666 = vrcp.pop %v665
    %v667 = vmul.f32 1.0, %v666
    %v668 = vtanh.pop %v661
    %v670 = vrot.slane %v573, 6
    %v672 = vmul.f32 %v667, %v670
    %674 = vrot.lane.b32.xlu0 %v668, 64
    %v675 = vpop.permute.xlu0 %674
    %v677 = vmul.f32 %v667, %v675
    %679 = vrot.lane.b32.xlu0 %v677, 32
    %v680 = vpop.permute.xlu0 %679
    %v682 = vadd.f32 %v672, %v680
    %v683 = vtanh.pop %v682
    %685 = vrot.lane.b32.xlu0 %v683, 64
    %v686 = vpop.permute.xlu0 %685
    %v688 = vmul.f32 %v667, %v686
    %690 = vrot.lane.b32.xlu0 %v688, 32
    %v691 = vpop.permute.xlu0 %690
    %693 = vst.msk [vmem:[#allocation2 + $0x8] sm:$0x3] %vm251, %v691
    %v694 = vsel %vm148, %v691, 0
    %696 = vmatprep.subr.mxu0 0.0
    %697 = vmatpush1.msra.mxu0 %v144
    %698 = vmatprep.subr.mxu0 0.0
    %699 = vmatpush1.msra.mxu0 %v145
    %700 = vmatprep.subr.mxu0 0.0
    %701 = vmatpush1.msra.mxu0 %v146
    %702 = vmatprep.subr.mxu0 0.0
    %703 = vmatpush1.msra.mxu0 %v147
    %704 = vmatprep.subr.mxu0 0.0
    %705 = vmatpush1.msra.mxu0 0.0
    %706 = vmatprep.subr.mxu0 0.0
    %707 = vmatpush1.msra.mxu0 0.0
    %708 = vmatprep.subr.mxu0 0.0
    %709 = vmatpush1.msra.mxu0 0.0
    %710 = vmatprep.subr.mxu0 0.0
    %711 = vmatpush1.msra.mxu0 0.0
    %712 = vmatprep.subr.mxu0 0.0
    %713 = vmatpush1.msra.mxu0 0.0
    %714 = vmatprep.subr.mxu0 0.0
    %715 = vmatpush1.msra.mxu0 0.0
    %716 = vmatprep.subr.mxu0 0.0
    %717 = vmatpush1.msra.mxu0 0.0
    %718 = vmatprep.subr.mxu0 0.0
    %719 = vmatpush1.msra.mxu0 0.0
    %720 = vmatprep.subr.mxu0 0.0
    %721 = vmatpush1.msra.mxu0 0.0
    %722 = vmatprep.subr.mxu0 0.0
    %723 = vmatpush1.msra.mxu0 0.0
    %724 = vmatprep.subr.mxu0 0.0
    %725 = vmatpush1.msra.mxu0 0.0
    %726 = vmatprep.subr.mxu0 0.0
    %727 = vmatpush1.msra.mxu0 0.0
    %728 = vmatprep.subr.mxu0 0.0
    %729 = vmatpush1.msra.mxu0 0.0
    %730 = vmatprep.subr.mxu0 0.0
    %731 = vmatpush1.msra.mxu0 0.0
    %732 = vmatprep.subr.mxu0 0.0
    %733 = vmatpush1.msra.mxu0 0.0
    %734 = vmatprep.subr.mxu0 0.0
    %735 = vmatpush1.msra.mxu0 0.0
    %736 = vmatprep.subr.mxu0 0.0
    %737 = vmatpush1.msra.mxu0 0.0
    %738 = vmatprep.subr.mxu0 0.0
    %739 = vmatpush1.msra.mxu0 0.0
    %740 = vmatprep.subr.mxu0 0.0
    %741 = vmatpush1.msra.mxu0 0.0
    %742 = vmatprep.subr.mxu0 0.0
    %743 = vmatpush1.msra.mxu0 0.0
    %744 = vmatprep.subr.mxu0 0.0
    %745 = vmatpush1.msra.mxu0 0.0
    %746 = vmatprep.subr.mxu0 0.0
    %747 = vmatpush1.msra.mxu0 0.0
    %748 = vmatprep.subr.mxu0 0.0
    %749 = vmatpush1.msra.mxu0 0.0
    %750 = vmatprep.subr.mxu0 0.0
    %751 = vmatpush1.msra.mxu0 0.0
    %752 = vmatprep.subr.mxu0 0.0
    %753 = vmatpush1.msra.mxu0 0.0
    %754 = vmatprep.subr.mxu0 0.0
    %755 = vmatpush1.msra.mxu0 0.0
    %756 = vmatprep.subr.mxu0 0.0
    %757 = vmatpush1.msra.mxu0 0.0
    %758 = vmatprep.subr.mxu0 0.0
    %759 = vmatpush1.msra.mxu0 0.0
    %760 = vmatprep.mubr.f32.mxu0 0.0
    %761 = vmatmul.mubr.f32.gmra.mrb[0].mxu0 %v694
    %v762 = vpop.f32.mrb[0].mxu0
    %v763 = vadd.f32 0.0, %v762
    %v764 = vpop.f32.mrb[0].mxu0
    %765 = vdwg.mxu0
    %v767 = vrot.slane %v763, 6
    %v769 = vadd.f32 %v141, %v767
    %v770 = vxor.u32 %v769, 2147483648
    %v771 = vmul.f32 %v770, 1.442695
    %v772 = vpow.pop %v771
    %v773 = vadd.f32 %v772, 1.0
    %v774 = vrcp.pop %v773
    %v775 = vmul.f32 1.0, %v774
    %v776 = vtanh.pop %v769
    %v778 = vrot.slane %v682, 6
    %v780 = vmul.f32 %v775, %v778
    %782 = vrot.lane.b32.xlu0 %v776, 64
    %v783 = vpop.permute.xlu0 %782
    %v785 = vmul.f32 %v775, %v783
    %787 = vrot.lane.b32.xlu0 %v785, 32
    %v788 = vpop.permute.xlu0 %787
    %v790 = vadd.f32 %v780, %v788
    %v791 = vtanh.pop %v790
    %793 = vrot.lane.b32.xlu0 %v791, 64
    %v794 = vpop.permute.xlu0 %793
    %v796 = vmul.f32 %v775, %v794
    %798 = vrot.lane.b32.xlu0 %v796, 32
    %v799 = vpop.permute.xlu0 %798
    %801 = vst.msk [vmem:[#allocation2 + $0x8] sm:$0xc] %vm360, %v799
    %v802 = vrot.slane %v796, 2
    %803 = vrot.lane.b32.xlu0 %v802, 32
    %v804 = vpop.permute.xlu0 %803
    %v805 = vsel %vm148, %v804, 0
    %807 = vmatprep.subr.mxu0 0.0
    %808 = vmatpush1.msra.mxu0 %v144
    %809 = vmatprep.subr.mxu0 0.0
    %810 = vmatpush1.msra.mxu0 %v145
    %811 = vmatprep.subr.mxu0 0.0
    %812 = vmatpush1.msra.mxu0 %v146
    %813 = vmatprep.subr.mxu0 0.0
    %814 = vmatpush1.msra.mxu0 %v147
    %815 = vmatprep.subr.mxu0 0.0
    %816 = vmatpush1.msra.mxu0 0.0
    %817 = vmatprep.subr.mxu0 0.0
    %818 = vmatpush1.msra.mxu0 0.0
    %819 = vmatprep.subr.mxu0 0.0
    %820 = vmatpush1.msra.mxu0 0.0
    %821 = vmatprep.subr.mxu0 0.0
    %822 = vmatpush1.msra.mxu0 0.0
    %823 = vmatprep.subr.mxu0 0.0
    %824 = vmatpush1.msra.mxu0 0.0
    %825 = vmatprep.subr.mxu0 0.0
    %826 = vmatpush1.msra.mxu0 0.0
    %827 = vmatprep.subr.mxu0 0.0
    %828 = vmatpush1.msra.mxu0 0.0
    %829 = vmatprep.subr.mxu0 0.0
    %830 = vmatpush1.msra.mxu0 0.0
    %831 = vmatprep.subr.mxu0 0.0
    %832 = vmatpush1.msra.mxu0 0.0
    %833 = vmatprep.subr.mxu0 0.0
    %834 = vmatpush1.msra.mxu0 0.0
    %835 = vmatprep.subr.mxu0 0.0
    %836 = vmatpush1.msra.mxu0 0.0
    %837 = vmatprep.subr.mxu0 0.0
    %838 = vmatpush1.msra.mxu0 0.0
    %839 = vmatprep.subr.mxu0 0.0
    %840 = vmatpush1.msra.mxu0 0.0
    %841 = vmatprep.subr.mxu0 0.0
    %842 = vmatpush1.msra.mxu0 0.0
    %843 = vmatprep.subr.mxu0 0.0
    %844 = vmatpush1.msra.mxu0 0.0
    %845 = vmatprep.subr.mxu0 0.0
    %846 = vmatpush1.msra.mxu0 0.0
    %847 = vmatprep.subr.mxu0 0.0
    %848 = vmatpush1.msra.mxu0 0.0
    %849 = vmatprep.subr.mxu0 0.0
    %850 = vmatpush1.msra.mxu0 0.0
    %851 = vmatprep.subr.mxu0 0.0
    %852 = vmatpush1.msra.mxu0 0.0
    %853 = vmatprep.subr.mxu0 0.0
    %854 = vmatpush1.msra.mxu0 0.0
    %855 = vmatprep.subr.mxu0 0.0
    %856 = vmatpush1.msra.mxu0 0.0
    %857 = vmatprep.subr.mxu0 0.0
    %858 = vmatpush1.msra.mxu0 0.0
    %859 = vmatprep.subr.mxu0 0.0
    %860 = vmatpush1.msra.mxu0 0.0
    %861 = vmatprep.subr.mxu0 0.0
    %862 = vmatpush1.msra.mxu0 0.0
    %863 = vmatprep.subr.mxu0 0.0
    %864 = vmatpush1.msra.mxu0 0.0
    %865 = vmatprep.subr.mxu0 0.0
    %866 = vmatpush1.msra.mxu0 0.0
    %867 = vmatprep.subr.mxu0 0.0
    %868 = vmatpush1.msra.mxu0 0.0
    %869 = vmatprep.subr.mxu0 0.0
    %870 = vmatpush1.msra.mxu0 0.0
    %871 = vmatprep.mubr.f32.mxu0 0.0
    %872 = vmatmul.mubr.f32.gmra.mrb[0].mxu0 %v805
    %v873 = vpop.f32.mrb[0].mxu0
    %v874 = vadd.f32 0.0, %v873
    %v875 = vpop.f32.mrb[0].mxu0
    %876 = vdwg.mxu0
    %v878 = vrot.slane %v874, 4
    %v880 = vadd.f32 %v141, %v878
    %v881 = vxor.u32 %v880, 2147483648
    %v882 = vmul.f32 %v881, 1.442695
    %v883 = vpow.pop %v882
    %v884 = vadd.f32 %v883, 1.0
    %v885 = vrcp.pop %v884
    %v886 = vmul.f32 1.0, %v885
    %v887 = vtanh.pop %v880
    %v889 = vrot.slane %v790, 6
    %v891 = vmul.f32 %v886, %v889
    %893 = vrot.lane.b32.xlu0 %v887, 64
    %v894 = vpop.permute.xlu0 %893
    %v896 = vmul.f32 %v886, %v894
    %898 = vrot.lane.b32.xlu0 %v896, 32
    %v899 = vpop.permute.xlu0 %898
    %v901 = vadd.f32 %v891, %v899
    %v902 = vtanh.pop %v901
    %904 = vrot.lane.b32.xlu0 %v902, 64
    %v905 = vpop.permute.xlu0 %904
    %v907 = vmul.f32 %v886, %v905
    %909 = vrot.lane.b32.xlu0 %v907, 32
    %v910 = vpop.permute.xlu0 %909
    %912 = vst.msk [vmem:[#allocation2 + $0x8] sm:$0x30] %vm472, %v910
    %v913 = vrot.slane %v907, 4
    %914 = vrot.lane.b32.xlu0 %v913, 32
    %v915 = vpop.permute.xlu0 %914
    %v916 = vsel %vm148, %v915, 0
    %918 = vmatprep.subr.mxu0 0.0
    %919 = vmatpush1.msra.mxu0 %v144
    %920 = vmatprep.subr.mxu0 0.0
    %921 = vmatpush1.msra.mxu0 %v145
    %922 = vmatprep.subr.mxu0 0.0
    %923 = vmatpush1.msra.mxu0 %v146
    %924 = vmatprep.subr.mxu0 0.0
    %925 = vmatpush1.msra.mxu0 %v147
    %926 = vmatprep.subr.mxu0 0.0
    %927 = vmatpush1.msra.mxu0 0.0
    %928 = vmatprep.subr.mxu0 0.0
    %929 = vmatpush1.msra.mxu0 0.0
    %930 = vmatprep.subr.mxu0 0.0
    %931 = vmatpush1.msra.mxu0 0.0
    %932 = vmatprep.subr.mxu0 0.0
    %933 = vmatpush1.msra.mxu0 0.0
    %934 = vmatprep.subr.mxu0 0.0
    %935 = vmatpush1.msra.mxu0 0.0
    %936 = vmatprep.subr.mxu0 0.0
    %937 = vmatpush1.msra.mxu0 0.0
    %938 = vmatprep.subr.mxu0 0.0
    %939 = vmatpush1.msra.mxu0 0.0
    %940 = vmatprep.subr.mxu0 0.0
    %941 = vmatpush1.msra.mxu0 0.0
    %942 = vmatprep.subr.mxu0 0.0
    %943 = vmatpush1.msra.mxu0 0.0
    %944 = vmatprep.subr.mxu0 0.0
    %945 = vmatpush1.msra.mxu0 0.0
    %946 = vmatprep.subr.mxu0 0.0
    %947 = vmatpush1.msra.mxu0 0.0
    %948 = vmatprep.subr.mxu0 0.0
    %949 = vmatpush1.msra.mxu0 0.0
    %950 = vmatprep.subr.mxu0 0.0
    %951 = vmatpush1.msra.mxu0 0.0
    %952 = vmatprep.subr.mxu0 0.0
    %953 = vmatpush1.msra.mxu0 0.0
    %954 = vmatprep.subr.mxu0 0.0
    %955 = vmatpush1.msra.mxu0 0.0
    %956 = vmatprep.subr.mxu0 0.0
    %957 = vmatpush1.msra.mxu0 0.0
    %958 = vmatprep.subr.mxu0 0.0
    %959 = vmatpush1.msra.mxu0 0.0
    %960 = vmatprep.subr.mxu0 0.0
    %961 = vmatpush1.msra.mxu0 0.0
    %962 = vmatprep.subr.mxu0 0.0
    %963 = vmatpush1.msra.mxu0 0.0
    %964 = vmatprep.subr.mxu0 0.0
    %965 = vmatpush1.msra.mxu0 0.0
    %966 = vmatprep.subr.mxu0 0.0
    %967 = vmatpush1.msra.mxu0 0.0
    %968 = vmatprep.subr.mxu0 0.0
    %969 = vmatpush1.msra.mxu0 0.0
    %970 = vmatprep.subr.mxu0 0.0
    %971 = vmatpush1.msra.mxu0 0.0
    %972 = vmatprep.subr.mxu0 0.0
    %973 = vmatpush1.msra.mxu0 0.0
    %974 = vmatprep.subr.mxu0 0.0
    %975 = vmatpush1.msra.mxu0 0.0
    %976 = vmatprep.subr.mxu0 0.0
    %977 = vmatpush1.msra.mxu0 0.0
    %978 = vmatprep.subr.mxu0 0.0
    %979 = vmatpush1.msra.mxu0 0.0
    %980 = vmatprep.subr.mxu0 0.0
    %981 = vmatpush1.msra.mxu0 0.0
    %982 = vmatprep.mubr.f32.mxu0 0.0
    %983 = vmatmul.mubr.f32.gmra.mrb[0].mxu0 %v916
    %v984 = vpop.f32.mrb[0].mxu0
    %v985 = vadd.f32 0.0, %v984
    %v986 = vpop.f32.mrb[0].mxu0
    %987 = vdwg.mxu0
    %v989 = vrot.slane %v985, 2
    %v991 = vadd.f32 %v141, %v989
    %v992 = vxor.u32 %v991, 2147483648
    %v993 = vmul.f32 %v992, 1.442695
    %v994 = vpow.pop %v993
    %v995 = vadd.f32 %v994, 1.0
    %v996 = vrcp.pop %v995
    %v997 = vmul.f32 1.0, %v996
    %v998 = vtanh.pop %v991
    %v1000 = vrot.slane %v901, 6
    %v1002 = vmul.f32 %v997, %v1000
    %1004 = vrot.lane.b32.xlu0 %v998, 64
    %v1005 = vpop.permute.xlu0 %1004
    %v1007 = vmul.f32 %v997, %v1005
    %1009 = vrot.lane.b32.xlu0 %v1007, 32
    %v1010 = vpop.permute.xlu0 %1009
    %v1012 = vadd.f32 %v1002, %v1010
    %v1013 = vtanh.pop %v1012
    %1015 = vrot.lane.b32.xlu0 %v1013, 64
    %v1016 = vpop.permute.xlu0 %1015
    %v1018 = vmul.f32 %v997, %v1016
    %1020 = vrot.lane.b32.xlu0 %v1018, 32
    %v1021 = vpop.permute.xlu0 %1020
    %1023 = vst.msk [vmem:[#allocation2 + $0x8] sm:$0xc0] %vm584, %v1021
    %v1024 = vld [vmem:[#allocation2] sm:$0xff]
    %v1025 = vld [vmem:[#allocation2 + $0x8] sm:$0xff]
    %v1026 = vld [vmem:[%s4] sm:$0xff]
    %v1027 = vld [vmem:[%s4 + $0x8] sm:$0xff]
    %v1028 = vld [vmem:[%s4 + $0x10] sm:$0xff]
    %v1029 = vld [vmem:[%s4 + $0x18] sm:$0xff]
    %v1030 = vld [vmem:[%s6] sm:$0x1]
    %v1032 = vlaneseq
    %v1033 = vshrl.u32 %v1032, 7
    %v1034 = vsub.s32 0, %v1033
    %v1035 = vrot.slane %v1030, %v1034
    %v1038 = vsel %vm148, %v1024, 0
    %v1041 = vsel %vm148, %v1025, 0
    %1043 = vmatprep.subr.mxu0 0.0
    %1044 = vmatpush1.msra.mxu0 %v1026
    %1045 = vmatprep.subr.mxu0 0.0
    %1046 = vmatpush1.msra.mxu0 %v1027
    %1047 = vmatprep.subr.mxu0 0.0
    %1048 = vmatpush1.msra.mxu0 %v1028
    %1049 = vmatprep.subr.mxu0 0.0
    %1050 = vmatpush1.msra.mxu0 %v1029
    %1051 = vmatprep.subr.mxu0 0.0
    %1052 = vmatpush1.msra.mxu0 0.0
    %1053 = vmatprep.subr.mxu0 0.0
    %1054 = vmatpush1.msra.mxu0 0.0
    %1055 = vmatprep.subr.mxu0 0.0
    %1056 = vmatpush1.msra.mxu0 0.0
    %1057 = vmatprep.subr.mxu0 0.0
    %1058 = vmatpush1.msra.mxu0 0.0
    %1059 = vmatprep.subr.mxu0 0.0
    %1060 = vmatpush1.msra.mxu0 0.0
    %1061 = vmatprep.subr.mxu0 0.0
    %1062 = vmatpush1.msra.mxu0 0.0
    %1063 = vmatprep.subr.mxu0 0.0
    %1064 = vmatpush1.msra.mxu0 0.0
    %1065 = vmatprep.subr.mxu0 0.0
    %1066 = vmatpush1.msra.mxu0 0.0
    %1067 = vmatprep.subr.mxu0 0.0
    %1068 = vmatpush1.msra.mxu0 0.0
    %1069 = vmatprep.subr.mxu0 0.0
    %1070 = vmatpush1.msra.mxu0 0.0
    %1071 = vmatprep.subr.mxu0 0.0
    %1072 = vmatpush1.msra.mxu0 0.0
    %1073 = vmatprep.subr.mxu0 0.0
    %1074 = vmatpush1.msra.mxu0 0.0
    %1075 = vmatprep.subr.mxu0 0.0
    %1076 = vmatpush1.msra.mxu0 0.0
    %1077 = vmatprep.subr.mxu0 0.0
    %1078 = vmatpush1.msra.mxu0 0.0
    %1079 = vmatprep.subr.mxu0 0.0
    %1080 = vmatpush1.msra.mxu0 0.0
    %1081 = vmatprep.subr.mxu0 0.0
    %1082 = vmatpush1.msra.mxu0 0.0
    %1083 = vmatprep.subr.mxu0 0.0
    %1084 = vmatpush1.msra.mxu0 0.0
    %1085 = vmatprep.subr.mxu0 0.0
    %1086 = vmatpush1.msra.mxu0 0.0
    %1087 = vmatprep.subr.mxu0 0.0
    %1088 = vmatpush1.msra.mxu0 0.0
    %1089 = vmatprep.subr.mxu0 0.0
    %1090 = vmatpush1.msra.mxu0 0.0
    %1091 = vmatprep.subr.mxu0 0.0
    %1092 = vmatpush1.msra.mxu0 0.0
    %1093 = vmatprep.subr.mxu0 0.0
    %1094 = vmatpush1.msra.mxu0 0.0
    %1095 = vmatprep.subr.mxu0 0.0
    %1096 = vmatpush1.msra.mxu0 0.0
    %1097 = vmatprep.subr.mxu0 0.0
    %1098 = vmatpush1.msra.mxu0 0.0
    %1099 = vmatprep.subr.mxu0 0.0
    %1100 = vmatpush1.msra.mxu0 0.0
    %1101 = vmatprep.subr.mxu0 0.0
    %1102 = vmatpush1.msra.mxu0 0.0
    %1103 = vmatprep.subr.mxu0 0.0
    %1104 = vmatpush1.msra.mxu0 0.0
    %1105 = vmatprep.subr.mxu0 0.0
    %1106 = vmatpush1.msra.mxu0 0.0
    %1107 = vmatprep.mubr.f32.mxu0 0.0
    %1108 = vmatmul.mubr.f32.gmra.mrb[0].mxu0 %v1038
    %v1109 = vpop.f32.mrb[0].mxu0
    %v1110 = vadd.f32 %v1035, %v1109
    %v1111 = vpop.f32.mrb[0].mxu0
    %1112 = vmatprep.mubr.f32.mxu0 0.0
    %1113 = vmatmul.mubr.f32.gmra.mrb[0].mxu0 %v1041
    %v1114 = vpop.f32.mrb[0].mxu0
    %v1115 = vadd.f32 %v1035, %v1114
    %v1116 = vpop.f32.mrb[0].mxu0
    %1117 = vdwg.mxu0
    %v1118 = vld [vmem:[#allocation4] sm:$0xff]
    %v1119 = vld [vmem:[#allocation4 + $0x8] sm:$0xff]
    %v1120 = vld [vmem:[#allocation4 + $0x10] sm:$0xff]
    %v1121 = vld [vmem:[#allocation4 + $0x18] sm:$0xff]
    %1122 = vmatprep.subr.mxu0 0.0
    %1123 = vmatpush1.msra.mxu0 %v1118
    %1124 = vmatprep.subr.mxu0 0.0
    %1125 = vmatpush1.msra.mxu0 %v1119
    %1126 = vmatprep.subr.mxu0 0.0
    %1127 = vmatpush1.msra.mxu0 %v1120
    %1128 = vmatprep.subr.mxu0 0.0
    %1129 = vmatpush1.msra.mxu0 %v1121
    %1130 = vmatprep.subr.mxu0 0.0
    %1131 = vmatpush1.msra.mxu0 0.0
    %1132 = vmatprep.subr.mxu0 0.0
    %1133 = vmatpush1.msra.mxu0 0.0
    %1134 = vmatprep.subr.mxu0 0.0
    %1135 = vmatpush1.msra.mxu0 0.0
    %1136 = vmatprep.subr.mxu0 0.0
    %1137 = vmatpush1.msra.mxu0 0.0
    %1138 = vmatprep.subr.mxu0 0.0
    %1139 = vmatpush1.msra.mxu0 0.0
    %1140 = vmatprep.subr.mxu0 0.0
    %1141 = vmatpush1.msra.mxu0 0.0
    %1142 = vmatprep.subr.mxu0 0.0
    %1143 = vmatpush1.msra.mxu0 0.0
    %1144 = vmatprep.subr.mxu0 0.0
    %1145 = vmatpush1.msra.mxu0 0.0
    %1146 = vmatprep.subr.mxu0 0.0
    %1147 = vmatpush1.msra.mxu0 0.0
    %1148 = vmatprep.subr.mxu0 0.0
    %1149 = vmatpush1.msra.mxu0 0.0
    %1150 = vmatprep.subr.mxu0 0.0
    %1151 = vmatpush1.msra.mxu0 0.0
    %1152 = vmatprep.subr.mxu0 0.0
    %1153 = vmatpush1.msra.mxu0 0.0
    %1154 = vmatprep.subr.mxu0 0.0
    %1155 = vmatpush1.msra.mxu0 0.0
    %1156 = vmatprep.subr.mxu0 0.0
    %1157 = vmatpush1.msra.mxu0 0.0
    %1158 = vmatprep.subr.mxu0 0.0
    %1159 = vmatpush1.msra.mxu0 0.0
    %1160 = vmatprep.subr.mxu0 0.0
    %1161 = vmatpush1.msra.mxu0 0.0
    %1162 = vmatprep.subr.mxu0 0.0
    %1163 = vmatpush1.msra.mxu0 0.0
    %1164 = vmatprep.subr.mxu0 0.0
    %1165 = vmatpush1.msra.mxu0 0.0
    %1166 = vmatprep.subr.mxu0 0.0
    %1167 = vmatpush1.msra.mxu0 0.0
    %1168 = vmatprep.subr.mxu0 0.0
    %1169 = vmatpush1.msra.mxu0 0.0
    %1170 = vmatprep.subr.mxu0 0.0
    %1171 = vmatpush1.msra.mxu0 0.0
    %1172 = vmatprep.subr.mxu0 0.0
    %1173 = vmatpush1.msra.mxu0 0.0
    %1174 = vmatprep.subr.mxu0 0.0
    %1175 = vmatpush1.msra.mxu0 0.0
    %1176 = vmatprep.subr.mxu0 0.0
    %1177 = vmatpush1.msra.mxu0 0.0
    %1178 = vmatprep.subr.mxu0 0.0
    %1179 = vmatpush1.msra.mxu0 0.0
    %1180 = vmatprep.subr.mxu0 0.0
    %1181 = vmatpush1.msra.mxu0 0.0
    %1182 = vmatprep.subr.mxu0 0.0
    %1183 = vmatpush1.msra.mxu0 0.0
    %1184 = vmatprep.subr.mxu0 0.0
    %1185 = vmatpush1.msra.mxu0 0.0
    %1186 = vmatprep.mubr.f32.mxu0 0.0
    %1187 = vmatmul.mubr.f32.gmra.mrb[0].mxu0 %v150
    %v1188 = vpop.f32.mrb[0].mxu0
    %v1189 = vadd.f32 0.0, %v1188
    %v1190 = vpop.f32.mrb[0].mxu0
    %1191 = vdwg.mxu0
    %v1192 = vadd.f32 %v1110, %v1189
    %v1193 = vxor.u32 %v1192, 2147483648
    %v1194 = vmul.f32 %v1193, 1.442695
    %v1195 = vpow.pop %v1194
    %v1196 = vadd.f32 %v1195, 1.0
    %v1197 = vrcp.pop %v1196
    %v1198 = vmul.f32 1.0, %v1197
    %v1199 = vtanh.pop %v1192
    %v1200 = vmul.f32 %v1198, 0.0
    %1202 = vrot.lane.b32.xlu0 %v1199, 64
    %v1203 = vpop.permute.xlu0 %1202
    %v1205 = vmul.f32 %v1198, %v1203
    %1207 = vrot.lane.b32.xlu0 %v1205, 32
    %v1208 = vpop.permute.xlu0 %1207
    %v1210 = vadd.f32 %v1200, %v1208
    %v1211 = vtanh.pop %v1210
    %1213 = vrot.lane.b32.xlu0 %v1211, 64
    %v1214 = vpop.permute.xlu0 %1213
    %v1216 = vmul.f32 %v1198, %v1214
    %1218 = vrot.lane.b32.xlu0 %v1216, 32
    %v1219 = vpop.permute.xlu0 %1218
    %v1220 = vsel %vm148, %v1219, 0
    %1222 = vmatprep.subr.mxu0 0.0
    %1223 = vmatpush1.msra.mxu0 %v1118
    %1224 = vmatprep.subr.mxu0 0.0
    %1225 = vmatpush1.msra.mxu0 %v1119
    %1226 = vmatprep.subr.mxu0 0.0
    %1227 = vmatpush1.msra.mxu0 %v1120
    %1228 = vmatprep.subr.mxu0 0.0
    %1229 = vmatpush1.msra.mxu0 %v1121
    %1230 = vmatprep.subr.mxu0 0.0
    %1231 = vmatpush1.msra.mxu0 0.0
    %1232 = vmatprep.subr.mxu0 0.0
    %1233 = vmatpush1.msra.mxu0 0.0
    %1234 = vmatprep.subr.mxu0 0.0
    %1235 = vmatpush1.msra.mxu0 0.0
    %1236 = vmatprep.subr.mxu0 0.0
    %1237 = vmatpush1.msra.mxu0 0.0
    %1238 = vmatprep.subr.mxu0 0.0
    %1239 = vmatpush1.msra.mxu0 0.0
    %1240 = vmatprep.subr.mxu0 0.0
    %1241 = vmatpush1.msra.mxu0 0.0
    %1242 = vmatprep.subr.mxu0 0.0
    %1243 = vmatpush1.msra.mxu0 0.0
    %1244 = vmatprep.subr.mxu0 0.0
    %1245 = vmatpush1.msra.mxu0 0.0
    %1246 = vmatprep.subr.mxu0 0.0
    %1247 = vmatpush1.msra.mxu0 0.0
    %1248 = vmatprep.subr.mxu0 0.0
    %1249 = vmatpush1.msra.mxu0 0.0
    %1250 = vmatprep.subr.mxu0 0.0
    %1251 = vmatpush1.msra.mxu0 0.0
    %1252 = vmatprep.subr.mxu0 0.0
    %1253 = vmatpush1.msra.mxu0 0.0
    %1254 = vmatprep.subr.mxu0 0.0
    %1255 = vmatpush1.msra.mxu0 0.0
    %1256 = vmatprep.subr.mxu0 0.0
    %1257 = vmatpush1.msra.mxu0 0.0
    %1258 = vmatprep.subr.mxu0 0.0
    %1259 = vmatpush1.msra.mxu0 0.0
    %1260 = vmatprep.subr.mxu0 0.0
    %1261 = vmatpush1.msra.mxu0 0.0
    %1262 = vmatprep.subr.mxu0 0.0
    %1263 = vmatpush1.msra.mxu0 0.0
    %1264 = vmatprep.subr.mxu0 0.0
    %1265 = vmatpush1.msra.mxu0 0.0
    %1266 = vmatprep.subr.mxu0 0.0
    %1267 = vmatpush1.msra.mxu0 0.0
    %1268 = vmatprep.subr.mxu0 0.0
    %1269 = vmatpush1.msra.mxu0 0.0
    %1270 = vmatprep.subr.mxu0 0.0
    %1271 = vmatpush1.msra.mxu0 0.0
    %1272 = vmatprep.subr.mxu0 0.0
    %1273 = vmatpush1.msra.mxu0 0.0
    %1274 = vmatprep.subr.mxu0 0.0
    %1275 = vmatpush1.msra.mxu0 0.0
    %1276 = vmatprep.subr.mxu0 0.0
    %1277 = vmatpush1.msra.mxu0 0.0
    %1278 = vmatprep.subr.mxu0 0.0
    %1279 = vmatpush1.msra.mxu0 0.0
    %1280 = vmatprep.subr.mxu0 0.0
    %1281 = vmatpush1.msra.mxu0 0.0
    %1282 = vmatprep.subr.mxu0 0.0
    %1283 = vmatpush1.msra.mxu0 0.0
    %1284 = vmatprep.subr.mxu0 0.0
    %1285 = vmatpush1.msra.mxu0 0.0
    %1286 = vmatprep.mubr.f32.mxu0 0.0
    %1287 = vmatmul.mubr.f32.gmra.mrb[0].mxu0 %v1220
    %v1288 = vpop.f32.mrb[0].mxu0
    %v1289 = vadd.f32 0.0, %v1288
    %v1290 = vpop.f32.mrb[0].mxu0
    %1291 = vdwg.mxu0
    %v1293 = vrot.slane %v1289, 6
    %v1295 = vadd.f32 %v1110, %v1293
    %v1296 = vxor.u32 %v1295, 2147483648
    %v1297 = vmul.f32 %v1296, 1.442695
    %v1298 = vpow.pop %v1297
    %v1299 = vadd.f32 %v1298, 1.0
    %v1300 = vrcp.pop %v1299
    %v1301 = vmul.f32 1.0, %v1300
    %v1302 = vtanh.pop %v1295
    %v1304 = vrot.slane %v1210, 6
    %v1306 = vmul.f32 %v1301, %v1304
    %1308 = vrot.lane.b32.xlu0 %v1302, 64
    %v1309 = vpop.permute.xlu0 %1308
    %v1311 = vmul.f32 %v1301, %v1309
    %1313 = vrot.lane.b32.xlu0 %v1311, 32
    %v1314 = vpop.permute.xlu0 %1313
    %v1316 = vadd.f32 %v1306, %v1314
    %v1317 = vtanh.pop %v1316
    %1319 = vrot.lane.b32.xlu0 %v1317, 64
    %v1320 = vpop.permute.xlu0 %1319
    %v1322 = vmul.f32 %v1301, %v1320
    %v1324 = vrot.slane %v1322, 2
    %1325 = vrot.lane.b32.xlu0 %v1324, 32
    %v1326 = vpop.permute.xlu0 %1325
    %v1327 = vsel %vm148, %v1326, 0
    %1329 = vmatprep.subr.mxu0 0.0
    %1330 = vmatpush1.msra.mxu0 %v1118
    %1331 = vmatprep.subr.mxu0 0.0
    %1332 = vmatpush1.msra.mxu0 %v1119
    %1333 = vmatprep.subr.mxu0 0.0
    %1334 = vmatpush1.msra.mxu0 %v1120
    %1335 = vmatprep.subr.mxu0 0.0
    %1336 = vmatpush1.msra.mxu0 %v1121
    %1337 = vmatprep.subr.mxu0 0.0
    %1338 = vmatpush1.msra.mxu0 0.0
    %1339 = vmatprep.subr.mxu0 0.0
    %1340 = vmatpush1.msra.mxu0 0.0
    %1341 = vmatprep.subr.mxu0 0.0
    %1342 = vmatpush1.msra.mxu0 0.0
    %1343 = vmatprep.subr.mxu0 0.0
    %1344 = vmatpush1.msra.mxu0 0.0
    %1345 = vmatprep.subr.mxu0 0.0
    %1346 = vmatpush1.msra.mxu0 0.0
    %1347 = vmatprep.subr.mxu0 0.0
    %1348 = vmatpush1.msra.mxu0 0.0
    %1349 = vmatprep.subr.mxu0 0.0
    %1350 = vmatpush1.msra.mxu0 0.0
    %1351 = vmatprep.subr.mxu0 0.0
    %1352 = vmatpush1.msra.mxu0 0.0
    %1353 = vmatprep.subr.mxu0 0.0
    %1354 = vmatpush1.msra.mxu0 0.0
    %1355 = vmatprep.subr.mxu0 0.0
    %1356 = vmatpush1.msra.mxu0 0.0
    %1357 = vmatprep.subr.mxu0 0.0
    %1358 = vmatpush1.msra.mxu0 0.0
    %1359 = vmatprep.subr.mxu0 0.0
    %1360 = vmatpush1.msra.mxu0 0.0
    %1361 = vmatprep.subr.mxu0 0.0
    %1362 = vmatpush1.msra.mxu0 0.0
    %1363 = vmatprep.subr.mxu0 0.0
    %1364 = vmatpush1.msra.mxu0 0.0
    %1365 = vmatprep.subr.mxu0 0.0
    %1366 = vmatpush1.msra.mxu0 0.0
    %1367 = vmatprep.subr.mxu0 0.0
    %1368 = vmatpush1.msra.mxu0 0.0
    %1369 = vmatprep.subr.mxu0 0.0
    %1370 = vmatpush1.msra.mxu0 0.0
    %1371 = vmatprep.subr.mxu0 0.0
    %1372 = vmatpush1.msra.mxu0 0.0
    %1373 = vmatprep.subr.mxu0 0.0
    %1374 = vmatpush1.msra.mxu0 0.0
    %1375 = vmatprep.subr.mxu0 0.0
    %1376 = vmatpush1.msra.mxu0 0.0
    %1377 = vmatprep.subr.mxu0 0.0
    %1378 = vmatpush1.msra.mxu0 0.0
    %1379 = vmatprep.subr.mxu0 0.0
    %1380 = vmatpush1.msra.mxu0 0.0
    %1381 = vmatprep.subr.mxu0 0.0
    %1382 = vmatpush1.msra.mxu0 0.0
    %1383 = vmatprep.subr.mxu0 0.0
    %1384 = vmatpush1.msra.mxu0 0.0
    %1385 = vmatprep.subr.mxu0 0.0
    %1386 = vmatpush1.msra.mxu0 0.0
    %1387 = vmatprep.subr.mxu0 0.0
    %1388 = vmatpush1.msra.mxu0 0.0
    %1389 = vmatprep.subr.mxu0 0.0
    %1390 = vmatpush1.msra.mxu0 0.0
    %1391 = vmatprep.subr.mxu0 0.0
    %1392 = vmatpush1.msra.mxu0 0.0
    %1393 = vmatprep.mubr.f32.mxu0 0.0
    %1394 = vmatmul.mubr.f32.gmra.mrb[0].mxu0 %v1327
    %v1395 = vpop.f32.mrb[0].mxu0
    %v1396 = vadd.f32 0.0, %v1395
    %v1397 = vpop.f32.mrb[0].mxu0
    %1398 = vdwg.mxu0
    %v1400 = vrot.slane %v1396, 4
    %v1402 = vadd.f32 %v1110, %v1400
    %v1403 = vxor.u32 %v1402, 2147483648
    %v1404 = vmul.f32 %v1403, 1.442695
    %v1405 = vpow.pop %v1404
    %v1406 = vadd.f32 %v1405, 1.0
    %v1407 = vrcp.pop %v1406
    %v1408 = vmul.f32 1.0, %v1407
    %v1409 = vtanh.pop %v1402
    %v1411 = vrot.slane %v1316, 6
    %v1413 = vmul.f32 %v1408, %v1411
    %1415 = vrot.lane.b32.xlu0 %v1409, 64
    %v1416 = vpop.permute.xlu0 %1415
    %v1418 = vmul.f32 %v1408, %v1416
    %1420 = vrot.lane.b32.xlu0 %v1418, 32
    %v1421 = vpop.permute.xlu0 %1420
    %v1423 = vadd.f32 %v1413, %v1421
    %v1424 = vtanh.pop %v1423
    %1426 = vrot.lane.b32.xlu0 %v1424, 64
    %v1427 = vpop.permute.xlu0 %1426
    %v1429 = vmul.f32 %v1408, %v1427
    %v1431 = vrot.slane %v1429, 4
    %1432 = vrot.lane.b32.xlu0 %v1431, 32
    %v1433 = vpop.permute.xlu0 %1432
    %v1434 = vsel %vm148, %v1433, 0
    %1436 = vmatprep.subr.mxu0 0.0
    %1437 = vmatpush1.msra.mxu0 %v1118
    %1438 = vmatprep.subr.mxu0 0.0
    %1439 = vmatpush1.msra.mxu0 %v1119
    %1440 = vmatprep.subr.mxu0 0.0
    %1441 = vmatpush1.msra.mxu0 %v1120
    %1442 = vmatprep.subr.mxu0 0.0
    %1443 = vmatpush1.msra.mxu0 %v1121
    %1444 = vmatprep.subr.mxu0 0.0
    %1445 = vmatpush1.msra.mxu0 0.0
    %1446 = vmatprep.subr.mxu0 0.0
    %1447 = vmatpush1.msra.mxu0 0.0
    %1448 = vmatprep.subr.mxu0 0.0
    %1449 = vmatpush1.msra.mxu0 0.0
    %1450 = vmatprep.subr.mxu0 0.0
    %1451 = vmatpush1.msra.mxu0 0.0
    %1452 = vmatprep.subr.mxu0 0.0
    %1453 = vmatpush1.msra.mxu0 0.0
    %1454 = vmatprep.subr.mxu0 0.0
    %1455 = vmatpush1.msra.mxu0 0.0
    %1456 = vmatprep.subr.mxu0 0.0
    %1457 = vmatpush1.msra.mxu0 0.0
    %1458 = vmatprep.subr.mxu0 0.0
    %1459 = vmatpush1.msra.mxu0 0.0
    %1460 = vmatprep.subr.mxu0 0.0
    %1461 = vmatpush1.msra.mxu0 0.0
    %1462 = vmatprep.subr.mxu0 0.0
    %1463 = vmatpush1.msra.mxu0 0.0
    %1464 = vmatprep.subr.mxu0 0.0
    %1465 = vmatpush1.msra.mxu0 0.0
    %1466 = vmatprep.subr.mxu0 0.0
    %1467 = vmatpush1.msra.mxu0 0.0
    %1468 = vmatprep.subr.mxu0 0.0
    %1469 = vmatpush1.msra.mxu0 0.0
    %1470 = vmatprep.subr.mxu0 0.0
    %1471 = vmatpush1.msra.mxu0 0.0
    %1472 = vmatprep.subr.mxu0 0.0
    %1473 = vmatpush1.msra.mxu0 0.0
    %1474 = vmatprep.subr.mxu0 0.0
    %1475 = vmatpush1.msra.mxu0 0.0
    %1476 = vmatprep.subr.mxu0 0.0
    %1477 = vmatpush1.msra.mxu0 0.0
    %1478 = vmatprep.subr.mxu0 0.0
    %1479 = vmatpush1.msra.mxu0 0.0
    %1480 = vmatprep.subr.mxu0 0.0
    %1481 = vmatpush1.msra.mxu0 0.0
    %1482 = vmatprep.subr.mxu0 0.0
    %1483 = vmatpush1.msra.mxu0 0.0
    %1484 = vmatprep.subr.mxu0 0.0
    %1485 = vmatpush1.msra.mxu0 0.0
    %1486 = vmatprep.subr.mxu0 0.0
    %1487 = vmatpush1.msra.mxu0 0.0
    %1488 = vmatprep.subr.mxu0 0.0
    %1489 = vmatpush1.msra.mxu0 0.0
    %1490 = vmatprep.subr.mxu0 0.0
    %1491 = vmatpush1.msra.mxu0 0.0
    %1492 = vmatprep.subr.mxu0 0.0
    %1493 = vmatpush1.msra.mxu0 0.0
    %1494 = vmatprep.subr.mxu0 0.0
    %1495 = vmatpush1.msra.mxu0 0.0
    %1496 = vmatprep.subr.mxu0 0.0
    %1497 = vmatpush1.msra.mxu0 0.0
    %1498 = vmatprep.subr.mxu0 0.0
    %1499 = vmatpush1.msra.mxu0 0.0
    %1500 = vmatprep.mubr.f32.mxu0 0.0
    %1501 = vmatmul.mubr.f32.gmra.mrb[0].mxu0 %v1434
    %v1502 = vpop.f32.mrb[0].mxu0
    %v1503 = vadd.f32 0.0, %v1502
    %v1504 = vpop.f32.mrb[0].mxu0
    %1505 = vdwg.mxu0
    %v1507 = vrot.slane %v1503, 2
    %v1509 = vadd.f32 %v1110, %v1507
    %v1510 = vxor.u32 %v1509, 2147483648
    %v1511 = vmul.f32 %v1510, 1.442695
    %v1512 = vpow.pop %v1511
    %v1513 = vadd.f32 %v1512, 1.0
    %v1514 = vrcp.pop %v1513
    %v1515 = vmul.f32 1.0, %v1514
    %v1516 = vtanh.pop %v1509
    %v1518 = vrot.slane %v1423, 6
    %v1520 = vmul.f32 %v1515, %v1518
    %1522 = vrot.lane.b32.xlu0 %v1516, 64
    %v1523 = vpop.permute.xlu0 %1522
    %v1525 = vmul.f32 %v1515, %v1523
    %1527 = vrot.lane.b32.xlu0 %v1525, 32
    %v1528 = vpop.permute.xlu0 %1527
    %v1530 = vadd.f32 %v1520, %v1528
    %v1531 = vtanh.pop %v1530
    %1533 = vrot.lane.b32.xlu0 %v1531, 64
    %v1534 = vpop.permute.xlu0 %1533
    %v1536 = vmul.f32 %v1515, %v1534
    %v1538 = vrot.slane %v1536, 6
    %1539 = vrot.lane.b32.xlu0 %v1538, 32
    %v1540 = vpop.permute.xlu0 %1539
    %v1541 = vsel %vm148, %v1540, 0
    %1543 = vmatprep.subr.mxu0 0.0
    %1544 = vmatpush1.msra.mxu0 %v1118
    %1545 = vmatprep.subr.mxu0 0.0
    %1546 = vmatpush1.msra.mxu0 %v1119
    %1547 = vmatprep.subr.mxu0 0.0
    %1548 = vmatpush1.msra.mxu0 %v1120
    %1549 = vmatprep.subr.mxu0 0.0
    %1550 = vmatpush1.msra.mxu0 %v1121
    %1551 = vmatprep.subr.mxu0 0.0
    %1552 = vmatpush1.msra.mxu0 0.0
    %1553 = vmatprep.subr.mxu0 0.0
    %1554 = vmatpush1.msra.mxu0 0.0
    %1555 = vmatprep.subr.mxu0 0.0
    %1556 = vmatpush1.msra.mxu0 0.0
    %1557 = vmatprep.subr.mxu0 0.0
    %1558 = vmatpush1.msra.mxu0 0.0
    %1559 = vmatprep.subr.mxu0 0.0
    %1560 = vmatpush1.msra.mxu0 0.0
    %1561 = vmatprep.subr.mxu0 0.0
    %1562 = vmatpush1.msra.mxu0 0.0
    %1563 = vmatprep.subr.mxu0 0.0
    %1564 = vmatpush1.msra.mxu0 0.0
    %1565 = vmatprep.subr.mxu0 0.0
    %1566 = vmatpush1.msra.mxu0 0.0
    %1567 = vmatprep.subr.mxu0 0.0
    %1568 = vmatpush1.msra.mxu0 0.0
    %1569 = vmatprep.subr.mxu0 0.0
    %1570 = vmatpush1.msra.mxu0 0.0
    %1571 = vmatprep.subr.mxu0 0.0
    %1572 = vmatpush1.msra.mxu0 0.0
    %1573 = vmatprep.subr.mxu0 0.0
    %1574 = vmatpush1.msra.mxu0 0.0
    %1575 = vmatprep.subr.mxu0 0.0
    %1576 = vmatpush1.msra.mxu0 0.0
    %1577 = vmatprep.subr.mxu0 0.0
    %1578 = vmatpush1.msra.mxu0 0.0
    %1579 = vmatprep.subr.mxu0 0.0
    %1580 = vmatpush1.msra.mxu0 0.0
    %1581 = vmatprep.subr.mxu0 0.0
    %1582 = vmatpush1.msra.mxu0 0.0
    %1583 = vmatprep.subr.mxu0 0.0
    %1584 = vmatpush1.msra.mxu0 0.0
    %1585 = vmatprep.subr.mxu0 0.0
    %1586 = vmatpush1.msra.mxu0 0.0
    %1587 = vmatprep.subr.mxu0 0.0
    %1588 = vmatpush1.msra.mxu0 0.0
    %1589 = vmatprep.subr.mxu0 0.0
    %1590 = vmatpush1.msra.mxu0 0.0
    %1591 = vmatprep.subr.mxu0 0.0
    %1592 = vmatpush1.msra.mxu0 0.0
    %1593 = vmatprep.subr.mxu0 0.0
    %1594 = vmatpush1.msra.mxu0 0.0
    %1595 = vmatprep.subr.mxu0 0.0
    %1596 = vmatpush1.msra.mxu0 0.0
    %1597 = vmatprep.subr.mxu0 0.0
    %1598 = vmatpush1.msra.mxu0 0.0
    %1599 = vmatprep.subr.mxu0 0.0
    %1600 = vmatpush1.msra.mxu0 0.0
    %1601 = vmatprep.subr.mxu0 0.0
    %1602 = vmatpush1.msra.mxu0 0.0
    %1603 = vmatprep.subr.mxu0 0.0
    %1604 = vmatpush1.msra.mxu0 0.0
    %1605 = vmatprep.subr.mxu0 0.0
    %1606 = vmatpush1.msra.mxu0 0.0
    %1607 = vmatprep.mubr.f32.mxu0 0.0
    %1608 = vmatmul.mubr.f32.gmra.mrb[0].mxu0 %v1541
    %v1609 = vpop.f32.mrb[0].mxu0
    %v1610 = vadd.f32 0.0, %v1609
    %v1611 = vpop.f32.mrb[0].mxu0
    %1612 = vdwg.mxu0
    %v1613 = vadd.f32 %v1115, %v1610
    %v1614 = vxor.u32 %v1613, 2147483648
    %v1615 = vmul.f32 %v1614, 1.442695
    %v1616 = vpow.pop %v1615
    %v1617 = vadd.f32 %v1616, 1.0
    %v1618 = vrcp.pop %v1617
    %v1619 = vmul.f32 1.0, %v1618
    %v1620 = vtanh.pop %v1613
    %v1622 = vrot.slane %v1530, 6
    %v1624 = vmul.f32 %v1619, %v1622
    %1626 = vrot.lane.b32.xlu0 %v1620, 64
    %v1627 = vpop.permute.xlu0 %1626
    %v1629 = vmul.f32 %v1619, %v1627
    %1631 = vrot.lane.b32.xlu0 %v1629, 32
    %v1632 = vpop.permute.xlu0 %1631
    %v1634 = vadd.f32 %v1624, %v1632
    %v1635 = vtanh.pop %v1634
    %1637 = vrot.lane.b32.xlu0 %v1635, 64
    %v1638 = vpop.permute.xlu0 %1637
    %v1640 = vmul.f32 %v1619, %v1638
    %1642 = vrot.lane.b32.xlu0 %v1640, 32
    %v1643 = vpop.permute.xlu0 %1642
    %v1644 = vsel %vm148, %v1643, 0
    %1646 = vmatprep.subr.mxu0 0.0
    %1647 = vmatpush1.msra.mxu0 %v1118
    %1648 = vmatprep.subr.mxu0 0.0
    %1649 = vmatpush1.msra.mxu0 %v1119
    %1650 = vmatprep.subr.mxu0 0.0
    %1651 = vmatpush1.msra.mxu0 %v1120
    %1652 = vmatprep.subr.mxu0 0.0
    %1653 = vmatpush1.msra.mxu0 %v1121
    %1654 = vmatprep.subr.mxu0 0.0
    %1655 = vmatpush1.msra.mxu0 0.0
    %1656 = vmatprep.subr.mxu0 0.0
    %1657 = vmatpush1.msra.mxu0 0.0
    %1658 = vmatprep.subr.mxu0 0.0
    %1659 = vmatpush1.msra.mxu0 0.0
    %1660 = vmatprep.subr.mxu0 0.0
    %1661 = vmatpush1.msra.mxu0 0.0
    %1662 = vmatprep.subr.mxu0 0.0
    %1663 = vmatpush1.msra.mxu0 0.0
    %1664 = vmatprep.subr.mxu0 0.0
    %1665 = vmatpush1.msra.mxu0 0.0
    %1666 = vmatprep.subr.mxu0 0.0
    %1667 = vmatpush1.msra.mxu0 0.0
    %1668 = vmatprep.subr.mxu0 0.0
    %1669 = vmatpush1.msra.mxu0 0.0
    %1670 = vmatprep.subr.mxu0 0.0
    %1671 = vmatpush1.msra.mxu0 0.0
    %1672 = vmatprep.subr.mxu0 0.0
    %1673 = vmatpush1.msra.mxu0 0.0
    %1674 = vmatprep.subr.mxu0 0.0
    %1675 = vmatpush1.msra.mxu0 0.0
    %1676 = vmatprep.subr.mxu0 0.0
    %1677 = vmatpush1.msra.mxu0 0.0
    %1678 = vmatprep.subr.mxu0 0.0
    %1679 = vmatpush1.msra.mxu0 0.0
    %1680 = vmatprep.subr.mxu0 0.0
    %1681 = vmatpush1.msra.mxu0 0.0
    %1682 = vmatprep.subr.mxu0 0.0
    %1683 = vmatpush1.msra.mxu0 0.0
    %1684 = vmatprep.subr.mxu0 0.0
    %1685 = vmatpush1.msra.mxu0 0.0
    %1686 = vmatprep.subr.mxu0 0.0
    %1687 = vmatpush1.msra.mxu0 0.0
    %1688 = vmatprep.subr.mxu0 0.0
    %1689 = vmatpush1.msra.mxu0 0.0
    %1690 = vmatprep.subr.mxu0 0.0
    %1691 = vmatpush1.msra.mxu0 0.0
    %1692 = vmatprep.subr.mxu0 0.0
    %1693 = vmatpush1.msra.mxu0 0.0
    %1694 = vmatprep.subr.mxu0 0.0
    %1695 = vmatpush1.msra.mxu0 0.0
    %1696 = vmatprep.subr.mxu0 0.0
    %1697 = vmatpush1.msra.mxu0 0.0
    %1698 = vmatprep.subr.mxu0 0.0
    %1699 = vmatpush1.msra.mxu0 0.0
    %1700 = vmatprep.subr.mxu0 0.0
    %1701 = vmatpush1.msra.mxu0 0.0
    %1702 = vmatprep.subr.mxu0 0.0
    %1703 = vmatpush1.msra.mxu0 0.0
    %1704 = vmatprep.subr.mxu0 0.0
    %1705 = vmatpush1.msra.mxu0 0.0
    %1706 = vmatprep.subr.mxu0 0.0
    %1707 = vmatpush1.msra.mxu0 0.0
    %1708 = vmatprep.subr.mxu0 0.0
    %1709 = vmatpush1.msra.mxu0 0.0
    %1710 = vmatprep.mubr.f32.mxu0 0.0
    %1711 = vmatmul.mubr.f32.gmra.mrb[0].mxu0 %v1644
    %v1712 = vpop.f32.mrb[0].mxu0
    %v1713 = vadd.f32 0.0, %v1712
    %v1714 = vpop.f32.mrb[0].mxu0
    %1715 = vdwg.mxu0
    %v1717 = vrot.slane %v1713, 6
    %v1719 = vadd.f32 %v1115, %v1717
    %v1720 = vxor.u32 %v1719, 2147483648
    %v1721 = vmul.f32 %v1720, 1.442695
    %v1722 = vpow.pop %v1721
    %v1723 = vadd.f32 %v1722, 1.0
    %v1724 = vrcp.pop %v1723
    %v1725 = vmul.f32 1.0, %v1724
    %v1726 = vtanh.pop %v1719
    %v1728 = vrot.slane %v1634, 6
    %v1730 = vmul.f32 %v1725, %v1728
    %1732 = vrot.lane.b32.xlu0 %v1726, 64
    %v1733 = vpop.permute.xlu0 %1732
    %v1735 = vmul.f32 %v1725, %v1733
    %1737 = vrot.lane.b32.xlu0 %v1735, 32
    %v1738 = vpop.permute.xlu0 %1737
    %v1740 = vadd.f32 %v1730, %v1738
    %v1741 = vtanh.pop %v1740
    %1743 = vrot.lane.b32.xlu0 %v1741, 64
    %v1744 = vpop.permute.xlu0 %1743
    %v1746 = vmul.f32 %v1725, %v1744
    %v1748 = vrot.slane %v1746, 2
    %1749 = vrot.lane.b32.xlu0 %v1748, 32
    %v1750 = vpop.permute.xlu0 %1749
    %v1751 = vsel %vm148, %v1750, 0
    %1753 = vmatprep.subr.mxu0 0.0
    %1754 = vmatpush1.msra.mxu0 %v1118
    %1755 = vmatprep.subr.mxu0 0.0
    %1756 = vmatpush1.msra.mxu0 %v1119
    %1757 = vmatprep.subr.mxu0 0.0
    %1758 = vmatpush1.msra.mxu0 %v1120
    %1759 = vmatprep.subr.mxu0 0.0
    %1760 = vmatpush1.msra.mxu0 %v1121
    %1761 = vmatprep.subr.mxu0 0.0
    %1762 = vmatpush1.msra.mxu0 0.0
    %1763 = vmatprep.subr.mxu0 0.0
    %1764 = vmatpush1.msra.mxu0 0.0
    %1765 = vmatprep.subr.mxu0 0.0
    %1766 = vmatpush1.msra.mxu0 0.0
    %1767 = vmatprep.subr.mxu0 0.0
    %1768 = vmatpush1.msra.mxu0 0.0
    %1769 = vmatprep.subr.mxu0 0.0
    %1770 = vmatpush1.msra.mxu0 0.0
    %1771 = vmatprep.subr.mxu0 0.0
    %1772 = vmatpush1.msra.mxu0 0.0
    %1773 = vmatprep.subr.mxu0 0.0
    %1774 = vmatpush1.msra.mxu0 0.0
    %1775 = vmatprep.subr.mxu0 0.0
    %1776 = vmatpush1.msra.mxu0 0.0
    %1777 = vmatprep.subr.mxu0 0.0
    %1778 = vmatpush1.msra.mxu0 0.0
    %1779 = vmatprep.subr.mxu0 0.0
    %1780 = vmatpush1.msra.mxu0 0.0
    %1781 = vmatprep.subr.mxu0 0.0
    %1782 = vmatpush1.msra.mxu0 0.0
    %1783 = vmatprep.subr.mxu0 0.0
    %1784 = vmatpush1.msra.mxu0 0.0
    %1785 = vmatprep.subr.mxu0 0.0
    %1786 = vmatpush1.msra.mxu0 0.0
    %1787 = vmatprep.subr.mxu0 0.0
    %1788 = vmatpush1.msra.mxu0 0.0
    %1789 = vmatprep.subr.mxu0 0.0
    %1790 = vmatpush1.msra.mxu0 0.0
    %1791 = vmatprep.subr.mxu0 0.0
    %1792 = vmatpush1.msra.mxu0 0.0
    %1793 = vmatprep.subr.mxu0 0.0
    %1794 = vmatpush1.msra.mxu0 0.0
    %1795 = vmatprep.subr.mxu0 0.0
    %1796 = vmatpush1.msra.mxu0 0.0
    %1797 = vmatprep.subr.mxu0 0.0
    %1798 = vmatpush1.msra.mxu0 0.0
    %1799 = vmatprep.subr.mxu0 0.0
    %1800 = vmatpush1.msra.mxu0 0.0
    %1801 = vmatprep.subr.mxu0 0.0
    %1802 = vmatpush1.msra.mxu0 0.0
    %1803 = vmatprep.subr.mxu0 0.0
    %1804 = vmatpush1.msra.mxu0 0.0
    %1805 = vmatprep.subr.mxu0 0.0
    %1806 = vmatpush1.msra.mxu0 0.0
    %1807 = vmatprep.subr.mxu0 0.0
    %1808 = vmatpush1.msra.mxu0 0.0
    %1809 = vmatprep.subr.mxu0 0.0
    %1810 = vmatpush1.msra.mxu0 0.0
    %1811 = vmatprep.subr.mxu0 0.0
    %1812 = vmatpush1.msra.mxu0 0.0
    %1813 = vmatprep.subr.mxu0 0.0
    %1814 = vmatpush1.msra.mxu0 0.0
    %1815 = vmatprep.subr.mxu0 0.0
    %1816 = vmatpush1.msra.mxu0 0.0
    %1817 = vmatprep.mubr.f32.mxu0 0.0
    %1818 = vmatmul.mubr.f32.gmra.mrb[0].mxu0 %v1751
    %v1819 = vpop.f32.mrb[0].mxu0
    %v1820 = vadd.f32 0.0, %v1819
    %v1821 = vpop.f32.mrb[0].mxu0
    %1822 = vdwg.mxu0
    %v1824 = vrot.slane %v1820, 4
    %v1826 = vadd.f32 %v1115, %v1824
    %v1827 = vxor.u32 %v1826, 2147483648
    %v1828 = vmul.f32 %v1827, 1.442695
    %v1829 = vpow.pop %v1828
    %v1830 = vadd.f32 %v1829, 1.0
    %v1831 = vrcp.pop %v1830
    %v1832 = vmul.f32 1.0, %v1831
    %v1833 = vtanh.pop %v1826
    %v1835 = vrot.slane %v1740, 6
    %v1837 = vmul.f32 %v1832, %v1835
    %1839 = vrot.lane.b32.xlu0 %v1833, 64
    %v1840 = vpop.permute.xlu0 %1839
    %v1842 = vmul.f32 %v1832, %v1840
    %1844 = vrot.lane.b32.xlu0 %v1842, 32
    %v1845 = vpop.permute.xlu0 %1844
    %v1847 = vadd.f32 %v1837, %v1845
    %v1848 = vtanh.pop %v1847
    %1850 = vrot.lane.b32.xlu0 %v1848, 64
    %v1851 = vpop.permute.xlu0 %1850
    %v1853 = vmul.f32 %v1832, %v1851
    %v1855 = vrot.slane %v1853, 4
    %1856 = vrot.lane.b32.xlu0 %v1855, 32
    %v1857 = vpop.permute.xlu0 %1856
    %v1858 = vsel %vm148, %v1857, 0
    %1860 = vmatprep.subr.mxu0 0.0
    %1861 = vmatpush1.msra.mxu0 %v1118
    %1862 = vmatprep.subr.mxu0 0.0
    %1863 = vmatpush1.msra.mxu0 %v1119
    %1864 = vmatprep.subr.mxu0 0.0
    %1865 = vmatpush1.msra.mxu0 %v1120
    %1866 = vmatprep.subr.mxu0 0.0
    %1867 = vmatpush1.msra.mxu0 %v1121
    %1868 = vmatprep.subr.mxu0 0.0
    %1869 = vmatpush1.msra.mxu0 0.0
    %1870 = vmatprep.subr.mxu0 0.0
    %1871 = vmatpush1.msra.mxu0 0.0
    %1872 = vmatprep.subr.mxu0 0.0
    %1873 = vmatpush1.msra.mxu0 0.0
    %1874 = vmatprep.subr.mxu0 0.0
    %1875 = vmatpush1.msra.mxu0 0.0
    %1876 = vmatprep.subr.mxu0 0.0
    %1877 = vmatpush1.msra.mxu0 0.0
    %1878 = vmatprep.subr.mxu0 0.0
    %1879 = vmatpush1.msra.mxu0 0.0
    %1880 = vmatprep.subr.mxu0 0.0
    %1881 = vmatpush1.msra.mxu0 0.0
    %1882 = vmatprep.subr.mxu0 0.0
    %1883 = vmatpush1.msra.mxu0 0.0
    %1884 = vmatprep.subr.mxu0 0.0
    %1885 = vmatpush1.msra.mxu0 0.0
    %1886 = vmatprep.subr.mxu0 0.0
    %1887 = vmatpush1.msra.mxu0 0.0
    %1888 = vmatprep.subr.mxu0 0.0
    %1889 = vmatpush1.msra.mxu0 0.0
    %1890 = vmatprep.subr.mxu0 0.0
    %1891 = vmatpush1.msra.mxu0 0.0
    %1892 = vmatprep.subr.mxu0 0.0
    %1893 = vmatpush1.msra.mxu0 0.0
    %1894 = vmatprep.subr.mxu0 0.0
    %1895 = vmatpush1.msra.mxu0 0.0
    %1896 = vmatprep.subr.mxu0 0.0
    %1897 = vmatpush1.msra.mxu0 0.0
    %1898 = vmatprep.subr.mxu0 0.0
    %1899 = vmatpush1.msra.mxu0 0.0
    %1900 = vmatprep.subr.mxu0 0.0
    %1901 = vmatpush1.msra.mxu0 0.0
    %1902 = vmatprep.subr.mxu0 0.0
    %1903 = vmatpush1.msra.mxu0 0.0
    %1904 = vmatprep.subr.mxu0 0.0
    %1905 = vmatpush1.msra.mxu0 0.0
    %1906 = vmatprep.subr.mxu0 0.0
    %1907 = vmatpush1.msra.mxu0 0.0
    %1908 = vmatprep.subr.mxu0 0.0
    %1909 = vmatpush1.msra.mxu0 0.0
    %1910 = vmatprep.subr.mxu0 0.0
    %1911 = vmatpush1.msra.mxu0 0.0
    %1912 = vmatprep.subr.mxu0 0.0
    %1913 = vmatpush1.msra.mxu0 0.0
    %1914 = vmatprep.subr.mxu0 0.0
    %1915 = vmatpush1.msra.mxu0 0.0
    %1916 = vmatprep.subr.mxu0 0.0
    %1917 = vmatpush1.msra.mxu0 0.0
    %1918 = vmatprep.subr.mxu0 0.0
    %1919 = vmatpush1.msra.mxu0 0.0
    %1920 = vmatprep.subr.mxu0 0.0
    %1921 = vmatpush1.msra.mxu0 0.0
    %1922 = vmatprep.subr.mxu0 0.0
    %1923 = vmatpush1.msra.mxu0 0.0
    %1924 = vmatprep.mubr.f32.mxu0 0.0
    %1925 = vmatmul.mubr.f32.gmra.mrb[0].mxu0 %v1858
    %v1926 = vpop.f32.mrb[0].mxu0
    %v1927 = vadd.f32 0.0, %v1926
    %v1928 = vpop.f32.mrb[0].mxu0
    %1929 = vdwg.mxu0
    %v1931 = vrot.slane %v1927, 2
    %v1933 = vadd.f32 %v1115, %v1931
    %v1934 = vxor.u32 %v1933, 2147483648
    %v1935 = vmul.f32 %v1934, 1.442695
    %v1936 = vpow.pop %v1935
    %v1937 = vadd.f32 %v1936, 1.0
    %v1938 = vrcp.pop %v1937
    %v1939 = vmul.f32 1.0, %v1938
    %v1940 = vtanh.pop %v1933
    %v1942 = vrot.slane %v1847, 6
    %v1944 = vmul.f32 %v1939, %v1942
    %1946 = vrot.lane.b32.xlu0 %v1940, 64
    %v1947 = vpop.permute.xlu0 %1946
    %v1949 = vmul.f32 %v1939, %v1947
    %1951 = vrot.lane.b32.xlu0 %v1949, 32
    %v1952 = vpop.permute.xlu0 %1951
    %v1954 = vadd.f32 %v1944, %v1952
    %v1955 = vtanh.pop %v1954
    %1957 = vrot.lane.b32.xlu0 %v1955, 64
    %v1958 = vpop.permute.xlu0 %1957
    %v1960 = vmul.f32 %v1939, %v1958
    %v1961 = vld [vmem:[%s7] sm:$0xff]
    %v1962 = vld [vmem:[%s7 + $0x8] sm:$0xff]
    %v1963 = vld [vmem:[%s7 + $0x10] sm:$0xff]
    %v1964 = vld [vmem:[%s7 + $0x18] sm:$0xff]
    %v1965 = vld [vmem:[#allocation3] sm:$0x1]
    %v1967 = vlaneseq
    %v1968 = vshrl.u32 %v1967, 7
    %v1969 = vsub.s32 0, %v1968
    %v1970 = vrot.slane %v1965, %v1969
    %v1973 = vrot.slane %v1960, 6
    %1974 = vrot.lane.b32.xlu0 %v1973, 32
    %v1975 = vpop.permute.xlu0 %1974
    %v1976 = vsel %vm148, %v1975, 0
    %1978 = vmatprep.subr.mxu0 0.0
    %1979 = vmatpush1.msra.mxu0 %v1961
    %1980 = vmatprep.subr.mxu0 0.0
    %1981 = vmatpush1.msra.mxu0 %v1962
    %1982 = vmatprep.subr.mxu0 0.0
    %1983 = vmatpush1.msra.mxu0 %v1963
    %1984 = vmatprep.subr.mxu0 0.0
    %1985 = vmatpush1.msra.mxu0 %v1964
    %1986 = vmatprep.subr.mxu0 0.0
    %1987 = vmatpush1.msra.mxu0 0.0
    %1988 = vmatprep.subr.mxu0 0.0
    %1989 = vmatpush1.msra.mxu0 0.0
    %1990 = vmatprep.subr.mxu0 0.0
    %1991 = vmatpush1.msra.mxu0 0.0
    %1992 = vmatprep.subr.mxu0 0.0
    %1993 = vmatpush1.msra.mxu0 0.0
    %1994 = vmatprep.subr.mxu0 0.0
    %1995 = vmatpush1.msra.mxu0 0.0
    %1996 = vmatprep.subr.mxu0 0.0
    %1997 = vmatpush1.msra.mxu0 0.0
    %1998 = vmatprep.subr.mxu0 0.0
    %1999 = vmatpush1.msra.mxu0 0.0
    %2000 = vmatprep.subr.mxu0 0.0
    %2001 = vmatpush1.msra.mxu0 0.0
    %2002 = vmatprep.subr.mxu0 0.0
    %2003 = vmatpush1.msra.mxu0 0.0
    %2004 = vmatprep.subr.mxu0 0.0
    %2005 = vmatpush1.msra.mxu0 0.0
    %2006 = vmatprep.subr.mxu0 0.0
    %2007 = vmatpush1.msra.mxu0 0.0
    %2008 = vmatprep.subr.mxu0 0.0
    %2009 = vmatpush1.msra.mxu0 0.0
    %2010 = vmatprep.subr.mxu0 0.0
    %2011 = vmatpush1.msra.mxu0 0.0
    %2012 = vmatprep.subr.mxu0 0.0
    %2013 = vmatpush1.msra.mxu0 0.0
    %2014 = vmatprep.subr.mxu0 0.0
    %2015 = vmatpush1.msra.mxu0 0.0
    %2016 = vmatprep.subr.mxu0 0.0
    %2017 = vmatpush1.msra.mxu0 0.0
    %2018 = vmatprep.subr.mxu0 0.0
    %2019 = vmatpush1.msra.mxu0 0.0
    %2020 = vmatprep.subr.mxu0 0.0
    %2021 = vmatpush1.msra.mxu0 0.0
    %2022 = vmatprep.subr.mxu0 0.0
    %2023 = vmatpush1.msra.mxu0 0.0
    %2024 = vmatprep.subr.mxu0 0.0
    %2025 = vmatpush1.msra.mxu0 0.0
    %2026 = vmatprep.subr.mxu0 0.0
    %2027 = vmatpush1.msra.mxu0 0.0
    %2028 = vmatprep.subr.mxu0 0.0
    %2029 = vmatpush1.msra.mxu0 0.0
    %2030 = vmatprep.subr.mxu0 0.0
    %2031 = vmatpush1.msra.mxu0 0.0
    %2032 = vmatprep.subr.mxu0 0.0
    %2033 = vmatpush1.msra.mxu0 0.0
    %2034 = vmatprep.subr.mxu0 0.0
    %2035 = vmatpush1.msra.mxu0 0.0
    %2036 = vmatprep.subr.mxu0 0.0
    %2037 = vmatpush1.msra.mxu0 0.0
    %2038 = vmatprep.subr.mxu0 0.0
    %2039 = vmatpush1.msra.mxu0 0.0
    %2040 = vmatprep.subr.mxu0 0.0
    %2041 = vmatpush1.msra.mxu0 0.0
    %2042 = vmatprep.mubr.f32.mxu0 0.0
    %2043 = vmatmul.mubr.f32.gmra.mrb[0].mxu0 %v1976
    %v2044 = vpop.f32.mrb[0].mxu0
    %v2045 = vadd.f32 %v1970, %v2044
    %v2046 = vpop.f32.mrb[0].mxu0
    %2047 = vdwg.mxu0
    %vm2048 = vcmask 1024
    %2049 = vst.msk [vmem:[%s9] sm:$0x3] %vm2048, %v2045
    // Predicated region
    $region42: #{health_forward.1} parent=1 // pred_check
      _
    $region43: #{health_forward.1} parent=1 // pred_check_branch
      %2051 = sbr.rel (0) target = $region45
    $region44: #{health_forward.1} parent=1 // pred_region
      _
    $region45: #{health_forward.1} parent=1 // pred_fallthru
      _
    // Predicated region
    $region46: #{health_forward.1} parent=1 // pred_check
      _
    $region47: #{health_forward.1} parent=1 // pred_check_branch
      %2053 = sbr.rel (0) target = $region49
    $region48: #{health_forward.1} parent=1 // pred_region
      _
    $region49: #{health_forward.1} parent=1 // pred_fallthru
      _
    %2054 = vsyncpa [#allocation5], 1

</llo_original>
